<compile_context>
chip_gen: v7x
topology: tpu7x:2x2x1
jax: 0.10.0
libtpu: 0.0.40
codegen_flags: <defaults>
</compile_context>

<pallas_src>
import jax
import jax.numpy as jnp
from jax.experimental import pallas as pl
from jax.experimental.pallas import tpu as pltpu


def _round_up(x, m):
    return ((x + m - 1) // m) * m


def mlp_kernel(
    u_ids_ref, i_ids_ref,        # (TB, 1) int32 id blocks (VMEM)
    user_tbl_ref, item_tbl_ref,  # (NUpad, E), (NIpad, E) -- VMEM-resident across grid steps
    w1_ref, b1_ref,              # (2E, H1), (1, H1)      -- VMEM-resident across grid steps
    w2_ref, b2_ref,              # (H1, H2), (1, H2)
    wp_ref,                      # (1, H2) projector weight
    out_ref,                     # (1, 1, TB) lane-dense block of scores
):
    tb = u_ids_ref.shape[0]
    nu = user_tbl_ref.shape[0]
    ni = item_tbl_ref.shape[0]
    e = user_tbl_ref.shape[1]

    # ---- Fused embedding gather: one-hot (iota == id) built on the VPU, gathered on the MXU. -------
    # Exact in f32 (0/1 weights), zero DMA traffic, and padded table rows / padded batch rows are
    # never selected (pad ids are 0, a real row; padded table rows are zero and never matched).
    u_oh = (jax.lax.broadcasted_iota(jnp.int32, (tb, nu), 1) == u_ids_ref[...]).astype(jnp.float32)
    i_oh = (jax.lax.broadcasted_iota(jnp.int32, (tb, ni), 1) == i_ids_ref[...]).astype(jnp.float32)
    u = jnp.dot(u_oh, user_tbl_ref[...], preferred_element_type=jnp.float32)    # (TB, E)
    it = jnp.dot(i_oh, item_tbl_ref[...], preferred_element_type=jnp.float32)   # (TB, E)

    # ---- Layer 1: [u | i] @ W1 + b1, ReLU  (concat folded into two MXU dots on the W1 halves) ------
    h = (
        jnp.dot(u, w1_ref[0:e, :], preferred_element_type=jnp.float32)
        + jnp.dot(it, w1_ref[e:2 * e, :], preferred_element_type=jnp.float32)
        + b1_ref[...]
    )
    h = jnp.maximum(h, 0.0)

    # ---- Layer 2: Linear + ReLU ---------------------------------------------------------------------
    h = jnp.dot(h, w2_ref[...], preferred_element_type=jnp.float32) + b2_ref[...]
    h = jnp.maximum(h, 0.0)

    # ---- Projector: Linear(H2 -> 1, no bias) as VPU mul + XLU lane reduce (no N=1 MXU pass) ---------
    score = jnp.sum(h * wp_ref[...], axis=-1)      # (TB,)
    out_ref[...] = score.reshape(1, 1, tb)         # lane-dense store


def mlp_forward(users, items, params, *, block_rows=None):
    """users, items: (B,) int ids. Returns (B,) f32 scores."""
    B = int(users.shape[0])
    n_users, E = params["embed_user"].shape
    n_items = params["embed_item"].shape[0]
    H1 = params["w1"].shape[1]
    H2 = params["w2"].shape[1]

    # Batch tile: lane-dense (multiple of 128); sized so the batch grid splits across both v7x
    # TensorCores when B > 128 (no-op on single-TC v5e/v6e). Capped at 512 rows per block.
    if block_rows is not None:
        tb = block_rows
    else:
        tb = min(512, max(128, _round_up(pl.cdiv(B, 2), 128)))
    nb = pl.cdiv(B, tb)
    b_pad = nb * tb

    # Pad ids to a whole number of blocks (pad id 0 gathers a real row; results are sliced off).
    u_ids = jnp.pad(users.astype(jnp.int32), (0, b_pad - B)).reshape(b_pad, 1)
    i_ids = jnp.pad(items.astype(jnp.int32), (0, b_pad - B)).reshape(b_pad, 1)

    # Pad table rows to a lane-friendly multiple of 128 (zero rows, never selected by the one-hot).
    nu_pad = _round_up(n_users, 128)
    ni_pad = _round_up(n_items, 128)
    user_tbl = jnp.pad(params["embed_user"].astype(jnp.float32),
                       ((0, nu_pad - n_users), (0, 0)))
    item_tbl = jnp.pad(params["embed_item"].astype(jnp.float32),
                       ((0, ni_pad - n_items), (0, 0)))

    grid_spec = pltpu.PrefetchScalarGridSpec(
        num_scalar_prefetch=0,
        grid=(nb,),
        in_specs=[
            pl.BlockSpec((tb, 1),      lambda g: (g, 0)),   # user ids block
            pl.BlockSpec((tb, 1),      lambda g: (g, 0)),   # item ids block
            pl.BlockSpec((nu_pad, E),  lambda g: (0, 0)),   # user table (VMEM-resident)
            pl.BlockSpec((ni_pad, E),  lambda g: (0, 0)),   # item table (VMEM-resident)
            pl.BlockSpec((2 * E, H1),  lambda g: (0, 0)),   # w1
            pl.BlockSpec((1, H1),      lambda g: (0, 0)),   # b1
            pl.BlockSpec((H1, H2),     lambda g: (0, 0)),   # w2
            pl.BlockSpec((1, H2),      lambda g: (0, 0)),   # b2
            pl.BlockSpec((1, H2),      lambda g: (0, 0)),   # wp
        ],
        out_specs=pl.BlockSpec((1, 1, tb), lambda g: (g, 0, 0)),
    )

    out = pl.pallas_call(
        mlp_kernel,
        out_shape=jax.ShapeDtypeStruct((nb, 1, tb), jnp.float32),
        grid_spec=grid_spec,
        compiler_params=pltpu.CompilerParams(
            dimension_semantics=("parallel",),   # batch blocks shard over both TCs on v7x
        ),
    )(
        u_ids, i_ids, user_tbl, item_tbl,
        params["w1"], params["b1"], params["w2"], params["b2"], params["wp"],
    )
    return out.reshape(-1)[:B]


def init_params(key, n_users, n_items, embedding_dim, hidden_sizes):
    """Deterministic synthetic init. Hidden Linear weights stored as (in, out); projector (1, H)."""
    sizes = [2 * embedding_dim] + list(hidden_sizes)
    keys = jax.random.split(key, 3 + len(sizes) - 1)
    params = {
        "embed_user": jax.random.normal(keys[0], (n_users, embedding_dim), jnp.float32) * 0.1,
        "embed_item": jax.random.normal(keys[1], (n_items, embedding_dim), jnp.float32) * 0.1,
    }
    for li in range(len(sizes) - 1):
        fin, fout = sizes[li], sizes[li + 1]
        w = jax.random.normal(keys[2 + li], (fin, fout), jnp.float32) * (1.0 / jnp.sqrt(fin))
        params[f"w{li + 1}"] = w
        params[f"b{li + 1}"] = jnp.zeros((1, fout), jnp.float32)   # nn.init.zeros_(bias)
    params["wp"] = (jax.random.normal(keys[-1], (1, sizes[-1]), jnp.float32)
                    * (1.0 / jnp.sqrt(sizes[-1])))
    return params


def mlp_reference(users, items, params):
    """Plain-JAX reference for correctness check (same math as the PyTorch module)."""
    feat = jnp.concatenate(
        [params["embed_user"][users], params["embed_item"][items]], axis=1)
    h = jnp.maximum(feat @ params["w1"] + params["b1"], 0.0)
    h = jnp.maximum(h @ params["w2"] + params["b2"], 0.0)
    # Projector written as an explicit dot product (mathematically identical to h @ wp.T).
    return jnp.sum(h * params["wp"], axis=-1)


if __name__ == "__main__":
    n_users, n_items = 100, 200
    embedding_dim = 16
    hidden_sizes = [32, 16]
    batch = 8

    key = jax.random.PRNGKey(0)
    k_params, k_u, k_i = jax.random.split(key, 3)
    params = init_params(k_params, n_users, n_items, embedding_dim, hidden_sizes)

    users = jax.random.randint(k_u, (batch,), 0, n_users, dtype=jnp.int32)
    items = jax.random.randint(k_i, (batch,), 0, n_items, dtype=jnp.int32)

    fwd = jax.jit(mlp_forward)
    score = jax.block_until_ready(fwd(users, items, params))
    ref = mlp_reference(users, items, params)
    assert score.shape == (batch,)
    assert jnp.allclose(score, ref, atol=1e-4, rtol=1e-4), (
        f"max abs diff = {float(jnp.max(jnp.abs(score - ref)))}")

    # Also exercise the multi-block batch grid (nb > 1, partial last block, padded ids).
    big_b = 1100
    k_u2, k_i2 = jax.random.split(jax.random.PRNGKey(1), 2)
    users2 = jax.random.randint(k_u2, (big_b,), 0, n_users, dtype=jnp.int32)
    items2 = jax.random.randint(k_i2, (big_b,), 0, n_items, dtype=jnp.int32)
    score2 = jax.block_until_ready(fwd(users2, items2, params))
    ref2 = mlp_reference(users2, items2, params)
    assert score2.shape == (big_b,)
    assert jnp.allclose(score2, ref2, atol=1e-4, rtol=1e-4), (
        f"max abs diff = {float(jnp.max(jnp.abs(score2 - ref2)))}")

    print("KERNEL_OK")
</pallas_src>

<mosaic_0001>
module attributes {stable_mosaic.version = 11 : i64} {
  func.func @mlp_kernel(%arg0: i32, %arg1: memref<128x1xi32, #tpu.memory_space<vmem>>, %arg2: memref<128x1xi32, #tpu.memory_space<vmem>>, %arg3: memref<128x16xf32, #tpu.memory_space<vmem>>, %arg4: memref<256x16xf32, #tpu.memory_space<vmem>>, %arg5: memref<32x32xf32, #tpu.memory_space<vmem>>, %arg6: memref<1x32xf32, #tpu.memory_space<vmem>>, %arg7: memref<32x16xf32, #tpu.memory_space<vmem>>, %arg8: memref<1x16xf32, #tpu.memory_space<vmem>>, %arg9: memref<1x16xf32, #tpu.memory_space<vmem>>, %arg10: memref<1x1x128xf32, #tpu.memory_space<vmem>>) attributes {dimension_semantics = [#tpu.dimension_semantics<parallel>], iteration_bounds = array<i64: 1>, scalar_prefetch = 0 : i64, scratch_operands = 0 : i64, tpu.core_type = #tpu.core_type<tc>, window_params = [{transform_indices = @transform_0, window_bounds = array<i64: 128, 1>}, {transform_indices = @transform_1, window_bounds = array<i64: 128, 1>}, {pipeline_mode = #tpu.pipeline_mode<synchronous>, transform_indices = @transform_2, window_bounds = array<i64: 128, 16>}, {pipeline_mode = #tpu.pipeline_mode<synchronous>, transform_indices = @transform_3, window_bounds = array<i64: 256, 16>}, {pipeline_mode = #tpu.pipeline_mode<synchronous>, transform_indices = @transform_4, window_bounds = array<i64: 32, 32>}, {pipeline_mode = #tpu.pipeline_mode<synchronous>, transform_indices = @transform_5, window_bounds = array<i64: 1, 32>}, {pipeline_mode = #tpu.pipeline_mode<synchronous>, transform_indices = @transform_6, window_bounds = array<i64: 32, 16>}, {pipeline_mode = #tpu.pipeline_mode<synchronous>, transform_indices = @transform_7, window_bounds = array<i64: 1, 16>}, {pipeline_mode = #tpu.pipeline_mode<synchronous>, transform_indices = @transform_8, window_bounds = array<i64: 1, 16>}, {transform_indices = @transform_9, window_bounds = array<i64: 1, 1, 128>}]} {
    %0 = tpu.iota {dimensions = array<i32: 1>} : vector<128x128xi32>
    %c0 = arith.constant 0 : index
    %c0_0 = arith.constant 0 : index
    %1 = vector.load %arg1[%c0, %c0_0] : memref<128x1xi32, #tpu.memory_space<vmem>>, vector<128x1xi32>
    %2 = vector.broadcast %1 : vector<128x1xi32> to vector<128x128xi32>
    %3 = arith.cmpi eq, %0, %2 : vector<128x128xi32>
    %4 = arith.extui %3 : vector<128x128xi1> to vector<128x128xi32>
    %5 = arith.sitofp %4 : vector<128x128xi32> to vector<128x128xf32>
    %6 = tpu.iota {dimensions = array<i32: 1>} : vector<128x256xi32>
    %c0_1 = arith.constant 0 : index
    %c0_2 = arith.constant 0 : index
    %7 = vector.load %arg2[%c0_1, %c0_2] : memref<128x1xi32, #tpu.memory_space<vmem>>, vector<128x1xi32>
    %8 = vector.broadcast %7 : vector<128x1xi32> to vector<128x256xi32>
    %9 = arith.cmpi eq, %6, %8 : vector<128x256xi32>
    %10 = arith.extui %9 : vector<128x256xi1> to vector<128x256xi32>
    %11 = arith.sitofp %10 : vector<128x256xi32> to vector<128x256xf32>
    %c0_3 = arith.constant 0 : index
    %c0_4 = arith.constant 0 : index
    %12 = vector.load %arg3[%c0_3, %c0_4] : memref<128x16xf32, #tpu.memory_space<vmem>>, vector<128x16xf32>
    %cst = arith.constant dense<0.000000e+00> : vector<128x16xf32>
    %13 = tpu.matmul %5, %12, %cst {dimension_numbers = #tpu.dot_dimension_numbers<[1], [0], [0], [1], [0, 0, 1, 1], [], []>} : vector<128x128xf32>, vector<128x16xf32>, vector<128x16xf32> -> vector<128x16xf32>
    %c0_5 = arith.constant 0 : index
    %c0_6 = arith.constant 0 : index
    %14 = vector.load %arg4[%c0_5, %c0_6] : memref<256x16xf32, #tpu.memory_space<vmem>>, vector<256x16xf32>
    %cst_7 = arith.constant dense<0.000000e+00> : vector<128x16xf32>
    %15 = tpu.matmul %11, %14, %cst_7 {dimension_numbers = #tpu.dot_dimension_numbers<[1], [0], [0], [1], [0, 0, 1, 1], [], []>} : vector<128x256xf32>, vector<256x16xf32>, vector<128x16xf32> -> vector<128x16xf32>
    %c0_8 = arith.constant 0 : index
    %c0_9 = arith.constant 0 : index
    %16 = vector.load %arg5[%c0_8, %c0_9] : memref<32x32xf32, #tpu.memory_space<vmem>>, vector<16x32xf32>
    %cst_10 = arith.constant dense<0.000000e+00> : vector<128x32xf32>
    %17 = tpu.matmul %13, %16, %cst_10 {dimension_numbers = #tpu.dot_dimension_numbers<[1], [0], [0], [1], [0, 0, 1, 1], [], []>} : vector<128x16xf32>, vector<16x32xf32>, vector<128x32xf32> -> vector<128x32xf32>
    %c16 = arith.constant 16 : index
    %c0_11 = arith.constant 0 : index
    %18 = vector.load %arg5[%c16, %c0_11] : memref<32x32xf32, #tpu.memory_space<vmem>>, vector<16x32xf32>
    %cst_12 = arith.constant dense<0.000000e+00> : vector<128x32xf32>
    %19 = tpu.matmul %15, %18, %cst_12 {dimension_numbers = #tpu.dot_dimension_numbers<[1], [0], [0], [1], [0, 0, 1, 1], [], []>} : vector<128x16xf32>, vector<16x32xf32>, vector<128x32xf32> -> vector<128x32xf32>
    %20 = arith.addf %17, %19 : vector<128x32xf32>
    %c0_13 = arith.constant 0 : index
    %c0_14 = arith.constant 0 : index
    %21 = vector.load %arg6[%c0_13, %c0_14] : memref<1x32xf32, #tpu.memory_space<vmem>>, vector<1x32xf32>
    %22 = vector.broadcast %21 : vector<1x32xf32> to vector<128x32xf32>
    %23 = arith.addf %20, %22 : vector<128x32xf32>
    %cst_15 = arith.constant 0.000000e+00 : f32
    %24 = vector.broadcast %cst_15 : f32 to vector<128x32xf32>
    %25 = arith.maximumf %23, %24 : vector<128x32xf32>
    %c0_16 = arith.constant 0 : index
    %c0_17 = arith.constant 0 : index
    %26 = vector.load %arg7[%c0_16, %c0_17] : memref<32x16xf32, #tpu.memory_space<vmem>>, vector<32x16xf32>
    %cst_18 = arith.constant dense<0.000000e+00> : vector<128x16xf32>
    %27 = tpu.matmul %25, %26, %cst_18 {dimension_numbers = #tpu.dot_dimension_numbers<[1], [0], [0], [1], [0, 0, 1, 1], [], []>} : vector<128x32xf32>, vector<32x16xf32>, vector<128x16xf32> -> vector<128x16xf32>
    %c0_19 = arith.constant 0 : index
    %c0_20 = arith.constant 0 : index
    %28 = vector.load %arg8[%c0_19, %c0_20] : memref<1x16xf32, #tpu.memory_space<vmem>>, vector<1x16xf32>
    %29 = vector.broadcast %28 : vector<1x16xf32> to vector<128x16xf32>
    %30 = arith.addf %27, %29 : vector<128x16xf32>
    %cst_21 = arith.constant 0.000000e+00 : f32
    %31 = vector.broadcast %cst_21 : f32 to vector<128x16xf32>
    %32 = arith.maximumf %30, %31 : vector<128x16xf32>
    %c0_22 = arith.constant 0 : index
    %c0_23 = arith.constant 0 : index
    %33 = vector.load %arg9[%c0_22, %c0_23] : memref<1x16xf32, #tpu.memory_space<vmem>>, vector<1x16xf32>
    %34 = vector.broadcast %33 : vector<1x16xf32> to vector<128x16xf32>
    %35 = arith.mulf %32, %34 : vector<128x16xf32>
    %cst_24 = arith.constant dense<0.000000e+00> : vector<128xf32>
    %36 = vector.multi_reduction <add>, %35, %cst_24 [1] : vector<128x16xf32> to vector<128xf32>
    %37 = vector.shape_cast %36 : vector<128xf32> to vector<1x1x128xf32>
    %c0_25 = arith.constant 0 : index
    %c0_26 = arith.constant 0 : index
    %c0_27 = arith.constant 0 : index
    %38 = vector.load %arg10[%c0_25, %c0_26, %c0_27] : memref<1x1x128xf32, #tpu.memory_space<vmem>>, vector<1x1x128xf32>
    tpu.vector_store %arg10[%c0_25, %c0_26, %c0_27], %37 {strides = array<i32>} : memref<1x1x128xf32, #tpu.memory_space<vmem>>, vector<1x1x128xf32>,
    return
  }
  func.func @transform_0(%arg0: i32) -> (i32, i32) {
    %c0_i32 = arith.constant 0 : i32
    %c0_i32_0 = arith.constant 0 : i32
    return %arg0, %c0_i32 : i32, i32
  }
  func.func @transform_1(%arg0: i32) -> (i32, i32) {
    %c0_i32 = arith.constant 0 : i32
    %c0_i32_0 = arith.constant 0 : i32
    return %arg0, %c0_i32 : i32, i32
  }
  func.func @transform_2(%arg0: i32) -> (i32, i32) {
    %c0_i32 = arith.constant 0 : i32
    %c0_i32_0 = arith.constant 0 : i32
    %c0_i32_1 = arith.constant 0 : i32
    return %c0_i32, %c0_i32_0 : i32, i32
  }
  func.func @transform_3(%arg0: i32) -> (i32, i32) {
    %c0_i32 = arith.constant 0 : i32
    %c0_i32_0 = arith.constant 0 : i32
    %c0_i32_1 = arith.constant 0 : i32
    return %c0_i32, %c0_i32_0 : i32, i32
  }
  func.func @transform_4(%arg0: i32) -> (i32, i32) {
    %c0_i32 = arith.constant 0 : i32
    %c0_i32_0 = arith.constant 0 : i32
    %c0_i32_1 = arith.constant 0 : i32
    return %c0_i32, %c0_i32_0 : i32, i32
  }
  func.func @transform_5(%arg0: i32) -> (i32, i32) {
    %c0_i32 = arith.constant 0 : i32
    %c0_i32_0 = arith.constant 0 : i32
    %c0_i32_1 = arith.constant 0 : i32
    return %c0_i32, %c0_i32_0 : i32, i32
  }
  func.func @transform_6(%arg0: i32) -> (i32, i32) {
    %c0_i32 = arith.constant 0 : i32
    %c0_i32_0 = arith.constant 0 : i32
    %c0_i32_1 = arith.constant 0 : i32
    return %c0_i32, %c0_i32_0 : i32, i32
  }
  func.func @transform_7(%arg0: i32) -> (i32, i32) {
    %c0_i32 = arith.constant 0 : i32
    %c0_i32_0 = arith.constant 0 : i32
    %c0_i32_1 = arith.constant 0 : i32
    return %c0_i32, %c0_i32_0 : i32, i32
  }
  func.func @transform_8(%arg0: i32) -> (i32, i32) {
    %c0_i32 = arith.constant 0 : i32
    %c0_i32_0 = arith.constant 0 : i32
    %c0_i32_1 = arith.constant 0 : i32
    return %c0_i32, %c0_i32_0 : i32, i32
  }
  func.func @transform_9(%arg0: i32) -> (i32, i32, i32) {
    %c0_i32 = arith.constant 0 : i32
    %c0_i32_0 = arith.constant 0 : i32
    %c0_i32_1 = arith.constant 0 : i32
    return %arg0, %c0_i32, %c0_i32_0 : i32, i32, i32
  }
}

</mosaic_0001>

<llo_original>
// kernel: mlp_forward.1
$region0: #{mlp_forward.1}
  #allocation0 [shape = 'u32[]', space=smem, size = 0x4, offset = 0x4, fixed_abs, tag = 'smem constant byte address 0x4 - core index']
  #allocation1 [shape = 'u32[144,128]{1,0:T(1,128)}', space=vmem, size = 0x12000, scoped, tag = 'internal scratch']
  %s0 = inlined_call_operand.vmem [shape: s32[128,1], index: 0, kind: input, shape index: {}]
  %s1 = inlined_call_operand.vmem [shape: s32[128,1], index: 1, kind: input, shape index: {}]
  %s2 = inlined_call_operand.vmem [shape: f32[128,16], index: 2, kind: input, shape index: {}]
  %s3 = inlined_call_operand.vmem [shape: f32[256,16], index: 3, kind: input, shape index: {}]
  %s4 = inlined_call_operand.vmem [shape: f32[32,32], index: 4, kind: input, shape index: {}]
  %s5 = inlined_call_operand.vmem [shape: f32[1,32], index: 5, kind: input, shape index: {}]
  %s6 = inlined_call_operand.vmem [shape: f32[32,16], index: 6, kind: input, shape index: {}]
  %s7 = inlined_call_operand.vmem [shape: f32[1,16], index: 7, kind: input, shape index: {}]
  %s8 = inlined_call_operand.vmem [shape: f32[1,16], index: 8, kind: input, shape index: {}]
  %s9 = inlined_call_operand.vmem [shape: f32[1,1,128], index: 9, kind: output, shape index: {}]
  %s10 = sld [smem:[#allocation0]]
  $region46: #{mlp_forward.1} parent=0
    _
  %s12 = ssub.s32 1, %s10
  %s13 = scalar_select 0, %s12, %s10
  // Predicated region
  $region2: #{mlp_forward.1} parent=0 // pred_check
    _
  $region3: #{mlp_forward.1} parent=0 // pred_check_branch
    %15 = sbr.rel (0) target = $region5
  $region4: #{mlp_forward.1} parent=0 // pred_region
    _
  $region5: #{mlp_forward.1} parent=0 // pred_fallthru
    _
  // Predicated region
  $region6: #{mlp_forward.1} parent=0 // pred_check
    _
  $region7: #{mlp_forward.1} parent=0 // pred_check_branch
    %17 = sbr.rel (0) target = $region9
  $region8: #{mlp_forward.1} parent=0 // pred_region
    _
  $region9: #{mlp_forward.1} parent=0 // pred_fallthru
    _
  // Predicated region
  $region10: #{mlp_forward.1} parent=0 // pred_check
    _
  $region11: #{mlp_forward.1} parent=0 // pred_check_branch
    %19 = sbr.rel (0) target = $region13
  $region12: #{mlp_forward.1} parent=0 // pred_region
    _
  $region13: #{mlp_forward.1} parent=0 // pred_fallthru
    _
  // Predicated region
  $region14: #{mlp_forward.1} parent=0 // pred_check
    _
  $region15: #{mlp_forward.1} parent=0 // pred_check_branch
    %21 = sbr.rel (0) target = $region17
  $region16: #{mlp_forward.1} parent=0 // pred_region
    _
  $region17: #{mlp_forward.1} parent=0 // pred_fallthru
    _
  // Predicated region
  $region18: #{mlp_forward.1} parent=0 // pred_check
    _
  $region19: #{mlp_forward.1} parent=0 // pred_check_branch
    %23 = sbr.rel (0) target = $region21
  $region20: #{mlp_forward.1} parent=0 // pred_region
    _
  $region21: #{mlp_forward.1} parent=0 // pred_fallthru
    _
  // Predicated region
  $region22: #{mlp_forward.1} parent=0 // pred_check
    _
  $region23: #{mlp_forward.1} parent=0 // pred_check_branch
    %25 = sbr.rel (0) target = $region25
  $region24: #{mlp_forward.1} parent=0 // pred_region
    _
  $region25: #{mlp_forward.1} parent=0 // pred_fallthru
    _
  // Predicated region
  $region26: #{mlp_forward.1} parent=0 // pred_check
    _
  $region27: #{mlp_forward.1} parent=0 // pred_check_branch
    %27 = sbr.rel (0) target = $region29
  $region28: #{mlp_forward.1} parent=0 // pred_region
    _
  $region29: #{mlp_forward.1} parent=0 // pred_fallthru
    _
  // Predicated region
  $region30: #{mlp_forward.1} parent=0 // pred_check
    _
  $region31: #{mlp_forward.1} parent=0 // pred_check_branch
    %29 = sbr.rel (0) target = $region33
  $region32: #{mlp_forward.1} parent=0 // pred_region
    _
  $region33: #{mlp_forward.1} parent=0 // pred_fallthru
    _
  // Predicated region
  $region34: #{mlp_forward.1} parent=0 // pred_check
    _
  $region35: #{mlp_forward.1} parent=0 // pred_check_branch
    %31 = sbr.rel (0) target = $region37
  $region36: #{mlp_forward.1} parent=0 // pred_region
    _
  $region37: #{mlp_forward.1} parent=0 // pred_fallthru
    _
  %v32 = vlaneseq
  %v33 = vand.u32 %v32, 127
  %v34 = vld [vmem:[%s0] sm:$0xff]
  %v35 = vld [vmem:[%s0 + $0x8] sm:$0xff]
  %v36 = vld [vmem:[%s0 + $0x10] sm:$0xff]
  %v37 = vld [vmem:[%s0 + $0x18] sm:$0xff]
  %v38 = vld [vmem:[%s0 + $0x20] sm:$0xff]
  %v39 = vld [vmem:[%s0 + $0x28] sm:$0xff]
  %v40 = vld [vmem:[%s0 + $0x30] sm:$0xff]
  %v41 = vld [vmem:[%s0 + $0x38] sm:$0xff]
  %v42 = vld [vmem:[%s0 + $0x40] sm:$0xff]
  %v43 = vld [vmem:[%s0 + $0x48] sm:$0xff]
  %v44 = vld [vmem:[%s0 + $0x50] sm:$0xff]
  %v45 = vld [vmem:[%s0 + $0x58] sm:$0xff]
  %v46 = vld [vmem:[%s0 + $0x60] sm:$0xff]
  %v47 = vld [vmem:[%s0 + $0x68] sm:$0xff]
  %v48 = vld [vmem:[%s0 + $0x70] sm:$0xff]
  %v49 = vld [vmem:[%s0 + $0x78] sm:$0xff]
  %50 = vset.pattern.permute.xlu0 0
  %51 = vperm.xlu0 %50, %v34
  %v52 = vpop.permute.xlu0 %51
  %53 = vset.pattern.permute.xlu0 0
  %54 = vperm.xlu0 %53, %v35
  %v55 = vpop.permute.xlu0 %54
  %56 = vset.pattern.permute.xlu0 0
  %57 = vperm.xlu0 %56, %v36
  %v58 = vpop.permute.xlu0 %57
  %59 = vset.pattern.permute.xlu0 0
  %60 = vperm.xlu0 %59, %v37
  %v61 = vpop.permute.xlu0 %60
  %62 = vset.pattern.permute.xlu0 0
  %63 = vperm.xlu0 %62, %v38
  %v64 = vpop.permute.xlu0 %63
  %65 = vset.pattern.permute.xlu0 0
  %66 = vperm.xlu0 %65, %v39
  %v67 = vpop.permute.xlu0 %66
  %68 = vset.pattern.permute.xlu0 0
  %69 = vperm.xlu0 %68, %v40
  %v70 = vpop.permute.xlu0 %69
  %71 = vset.pattern.permute.xlu0 0
  %72 = vperm.xlu0 %71, %v41
  %v73 = vpop.permute.xlu0 %72
  %74 = vset.pattern.permute.xlu0 0
  %75 = vperm.xlu0 %74, %v42
  %v76 = vpop.permute.xlu0 %75
  %77 = vset.pattern.permute.xlu0 0
  %78 = vperm.xlu0 %77, %v43
  %v79 = vpop.permute.xlu0 %78
  %80 = vset.pattern.permute.xlu0 0
  %81 = vperm.xlu0 %80, %v44
  %v82 = vpop.permute.xlu0 %81
  %83 = vset.pattern.permute.xlu0 0
  %84 = vperm.xlu0 %83, %v45
  %v85 = vpop.permute.xlu0 %84
  %86 = vset.pattern.permute.xlu0 0
  %87 = vperm.xlu0 %86, %v46
  %v88 = vpop.permute.xlu0 %87
  %89 = vset.pattern.permute.xlu0 0
  %90 = vperm.xlu0 %89, %v47
  %v91 = vpop.permute.xlu0 %90
  %92 = vset.pattern.permute.xlu0 0
  %93 = vperm.xlu0 %92, %v48
  %v94 = vpop.permute.xlu0 %93
  %95 = vset.pattern.permute.xlu0 0
  %96 = vperm.xlu0 %95, %v49
  %v97 = vpop.permute.xlu0 %96
  %vm98 = vcmp.eq.s32.totalorder %v33, %v52
  %vm99 = vcmp.eq.s32.totalorder %v33, %v55
  %vm100 = vcmp.eq.s32.totalorder %v33, %v58
  %vm101 = vcmp.eq.s32.totalorder %v33, %v61
  %vm102 = vcmp.eq.s32.totalorder %v33, %v64
  %vm103 = vcmp.eq.s32.totalorder %v33, %v67
  %vm104 = vcmp.eq.s32.totalorder %v33, %v70
  %vm105 = vcmp.eq.s32.totalorder %v33, %v73
  %vm106 = vcmp.eq.s32.totalorder %v33, %v76
  %vm107 = vcmp.eq.s32.totalorder %v33, %v79
  %vm108 = vcmp.eq.s32.totalorder %v33, %v82
  %vm109 = vcmp.eq.s32.totalorder %v33, %v85
  %vm110 = vcmp.eq.s32.totalorder %v33, %v88
  %vm111 = vcmp.eq.s32.totalorder %v33, %v91
  %vm112 = vcmp.eq.s32.totalorder %v33, %v94
  %vm113 = vcmp.eq.s32.totalorder %v33, %v97
  %v114 = vsel %vm98, 1, 0
  %v115 = vsel %vm99, 1, 0
  %v116 = vsel %vm100, 1, 0
  %v117 = vsel %vm101, 1, 0
  %v118 = vsel %vm102, 1, 0
  %v119 = vsel %vm103, 1, 0
  %v120 = vsel %vm104, 1, 0
  %v121 = vsel %vm105, 1, 0
  %v122 = vsel %vm106, 1, 0
  %v123 = vsel %vm107, 1, 0
  %v124 = vsel %vm108, 1, 0
  %v125 = vsel %vm109, 1, 0
  %v126 = vsel %vm110, 1, 0
  %v127 = vsel %vm111, 1, 0
  %v128 = vsel %vm112, 1, 0
  %v129 = vsel %vm113, 1, 0
  %v130 = vcvt.s32.f32 %v114
  %v131 = vcvt.s32.f32 %v115
  %v132 = vcvt.s32.f32 %v116
  %v133 = vcvt.s32.f32 %v117
  %v134 = vcvt.s32.f32 %v118
  %v135 = vcvt.s32.f32 %v119
  %v136 = vcvt.s32.f32 %v120
  %v137 = vcvt.s32.f32 %v121
  %v138 = vcvt.s32.f32 %v122
  %v139 = vcvt.s32.f32 %v123
  %v140 = vcvt.s32.f32 %v124
  %v141 = vcvt.s32.f32 %v125
  %v142 = vcvt.s32.f32 %v126
  %v143 = vcvt.s32.f32 %v127
  %v144 = vcvt.s32.f32 %v128
  %v145 = vcvt.s32.f32 %v129
  %v146 = vadd.s32 %v33, 128
  %v147 = vld [vmem:[%s1] sm:$0xff]
  %v148 = vld [vmem:[%s1 + $0x8] sm:$0xff]
  %v149 = vld [vmem:[%s1 + $0x10] sm:$0xff]
  %v150 = vld [vmem:[%s1 + $0x18] sm:$0xff]
  %v151 = vld [vmem:[%s1 + $0x20] sm:$0xff]
  %v152 = vld [vmem:[%s1 + $0x28] sm:$0xff]
  %v153 = vld [vmem:[%s1 + $0x30] sm:$0xff]
  %v154 = vld [vmem:[%s1 + $0x38] sm:$0xff]
  %v155 = vld [vmem:[%s1 + $0x40] sm:$0xff]
  %v156 = vld [vmem:[%s1 + $0x48] sm:$0xff]
  %v157 = vld [vmem:[%s1 + $0x50] sm:$0xff]
  %v158 = vld [vmem:[%s1 + $0x58] sm:$0xff]
  %v159 = vld [vmem:[%s1 + $0x60] sm:$0xff]
  %v160 = vld [vmem:[%s1 + $0x68] sm:$0xff]
  %v161 = vld [vmem:[%s1 + $0x70] sm:$0xff]
  %v162 = vld [vmem:[%s1 + $0x78] sm:$0xff]
  %163 = vset.pattern.permute.xlu0 0
  %164 = vperm.xlu0 %163, %v147
  %v165 = vpop.permute.xlu0 %164
  %166 = vset.pattern.permute.xlu0 0
  %167 = vperm.xlu0 %166, %v148
  %v168 = vpop.permute.xlu0 %167
  %169 = vset.pattern.permute.xlu0 0
  %170 = vperm.xlu0 %169, %v149
  %v171 = vpop.permute.xlu0 %170
  %172 = vset.pattern.permute.xlu0 0
  %173 = vperm.xlu0 %172, %v150
  %v174 = vpop.permute.xlu0 %173
  %175 = vset.pattern.permute.xlu0 0
  %176 = vperm.xlu0 %175, %v151
  %v177 = vpop.permute.xlu0 %176
  %178 = vset.pattern.permute.xlu0 0
  %179 = vperm.xlu0 %178, %v152
  %v180 = vpop.permute.xlu0 %179
  %181 = vset.pattern.permute.xlu0 0
  %182 = vperm.xlu0 %181, %v153
  %v183 = vpop.permute.xlu0 %182
  %184 = vset.pattern.permute.xlu0 0
  %185 = vperm.xlu0 %184, %v154
  %v186 = vpop.permute.xlu0 %185
  %187 = vset.pattern.permute.xlu0 0
  %188 = vperm.xlu0 %187, %v155
  %v189 = vpop.permute.xlu0 %188
  %190 = vset.pattern.permute.xlu0 0
  %191 = vperm.xlu0 %190, %v156
  %v192 = vpop.permute.xlu0 %191
  %193 = vset.pattern.permute.xlu0 0
  %194 = vperm.xlu0 %193, %v157
  %v195 = vpop.permute.xlu0 %194
  %196 = vset.pattern.permute.xlu0 0
  %197 = vperm.xlu0 %196, %v158
  %v198 = vpop.permute.xlu0 %197
  %199 = vset.pattern.permute.xlu0 0
  %200 = vperm.xlu0 %199, %v159
  %v201 = vpop.permute.xlu0 %200
  %202 = vset.pattern.permute.xlu0 0
  %203 = vperm.xlu0 %202, %v160
  %v204 = vpop.permute.xlu0 %203
  %205 = vset.pattern.permute.xlu0 0
  %206 = vperm.xlu0 %205, %v161
  %v207 = vpop.permute.xlu0 %206
  %208 = vset.pattern.permute.xlu0 0
  %209 = vperm.xlu0 %208, %v162
  %v210 = vpop.permute.xlu0 %209
  %vm211 = vcmp.eq.s32.totalorder %v33, %v165
  %vm212 = vcmp.eq.s32.totalorder %v146, %v165
  %vm213 = vcmp.eq.s32.totalorder %v33, %v168
  %vm214 = vcmp.eq.s32.totalorder %v146, %v168
  %vm215 = vcmp.eq.s32.totalorder %v33, %v171
  %vm216 = vcmp.eq.s32.totalorder %v146, %v171
  %vm217 = vcmp.eq.s32.totalorder %v33, %v174
  %vm218 = vcmp.eq.s32.totalorder %v146, %v174
  %vm219 = vcmp.eq.s32.totalorder %v33, %v177
  %vm220 = vcmp.eq.s32.totalorder %v146, %v177
  %vm221 = vcmp.eq.s32.totalorder %v33, %v180
  %vm222 = vcmp.eq.s32.totalorder %v146, %v180
  %vm223 = vcmp.eq.s32.totalorder %v33, %v183
  %vm224 = vcmp.eq.s32.totalorder %v146, %v183
  %vm225 = vcmp.eq.s32.totalorder %v33, %v186
  %vm226 = vcmp.eq.s32.totalorder %v146, %v186
  %vm227 = vcmp.eq.s32.totalorder %v33, %v189
  %vm228 = vcmp.eq.s32.totalorder %v146, %v189
  %vm229 = vcmp.eq.s32.totalorder %v33, %v192
  %vm230 = vcmp.eq.s32.totalorder %v146, %v192
  %vm231 = vcmp.eq.s32.totalorder %v33, %v195
  %vm232 = vcmp.eq.s32.totalorder %v146, %v195
  %vm233 = vcmp.eq.s32.totalorder %v33, %v198
  %vm234 = vcmp.eq.s32.totalorder %v146, %v198
  %vm235 = vcmp.eq.s32.totalorder %v33, %v201
  %vm236 = vcmp.eq.s32.totalorder %v146, %v201
  %vm237 = vcmp.eq.s32.totalorder %v33, %v204
  %vm238 = vcmp.eq.s32.totalorder %v146, %v204
  %vm239 = vcmp.eq.s32.totalorder %v33, %v207
  %vm240 = vcmp.eq.s32.totalorder %v146, %v207
  %vm241 = vcmp.eq.s32.totalorder %v33, %v210
  %vm242 = vcmp.eq.s32.totalorder %v146, %v210
  %v243 = vsel %vm211, 1, 0
  %v244 = vsel %vm212, 1, 0
  %v245 = vsel %vm213, 1, 0
  %v246 = vsel %vm214, 1, 0
  %v247 = vsel %vm215, 1, 0
  %v248 = vsel %vm216, 1, 0
  %v249 = vsel %vm217, 1, 0
  %v250 = vsel %vm218, 1, 0
  %v251 = vsel %vm219, 1, 0
  %v252 = vsel %vm220, 1, 0
  %v253 = vsel %vm221, 1, 0
  %v254 = vsel %vm222, 1, 0
  %v255 = vsel %vm223, 1, 0
  %v256 = vsel %vm224, 1, 0
  %v257 = vsel %vm225, 1, 0
  %v258 = vsel %vm226, 1, 0
  %v259 = vsel %vm227, 1, 0
  %v260 = vsel %vm228, 1, 0
  %v261 = vsel %vm229, 1, 0
  %v262 = vsel %vm230, 1, 0
  %v263 = vsel %vm231, 1, 0
  %v264 = vsel %vm232, 1, 0
  %v265 = vsel %vm233, 1, 0
  %v266 = vsel %vm234, 1, 0
  %v267 = vsel %vm235, 1, 0
  %v268 = vsel %vm236, 1, 0
  %v269 = vsel %vm237, 1, 0
  %v270 = vsel %vm238, 1, 0
  %v271 = vsel %vm239, 1, 0
  %v272 = vsel %vm240, 1, 0
  %v273 = vsel %vm241, 1, 0
  %v274 = vsel %vm242, 1, 0
  %v275 = vcvt.s32.f32 %v243
  %v276 = vcvt.s32.f32 %v244
  %v277 = vcvt.s32.f32 %v245
  %v278 = vcvt.s32.f32 %v246
  %v279 = vcvt.s32.f32 %v247
  %v280 = vcvt.s32.f32 %v248
  %v281 = vcvt.s32.f32 %v249
  %v282 = vcvt.s32.f32 %v250
  %v283 = vcvt.s32.f32 %v251
  %v284 = vcvt.s32.f32 %v252
  %v285 = vcvt.s32.f32 %v253
  %v286 = vcvt.s32.f32 %v254
  %v287 = vcvt.s32.f32 %v255
  %v288 = vcvt.s32.f32 %v256
  %v289 = vcvt.s32.f32 %v257
  %v290 = vcvt.s32.f32 %v258
  %v291 = vcvt.s32.f32 %v259
  %v292 = vcvt.s32.f32 %v260
  %v293 = vcvt.s32.f32 %v261
  %v294 = vcvt.s32.f32 %v262
  %v295 = vcvt.s32.f32 %v263
  %v296 = vcvt.s32.f32 %v264
  %v297 = vcvt.s32.f32 %v265
  %v298 = vcvt.s32.f32 %v266
  %v299 = vcvt.s32.f32 %v267
  %v300 = vcvt.s32.f32 %v268
  %v301 = vcvt.s32.f32 %v269
  %v302 = vcvt.s32.f32 %v270
  %v303 = vcvt.s32.f32 %v271
  %v304 = vcvt.s32.f32 %v272
  %v305 = vcvt.s32.f32 %v273
  %v306 = vcvt.s32.f32 %v274
  %v307 = vld [vmem:[%s2] sm:$0xff]
  %v308 = vld [vmem:[%s2 + $0x8] sm:$0xff]
  %v309 = vld [vmem:[%s2 + $0x10] sm:$0xff]
  %v310 = vld [vmem:[%s2 + $0x18] sm:$0xff]
  %v311 = vld [vmem:[%s2 + $0x20] sm:$0xff]
  %v312 = vld [vmem:[%s2 + $0x28] sm:$0xff]
  %v313 = vld [vmem:[%s2 + $0x30] sm:$0xff]
  %v314 = vld [vmem:[%s2 + $0x38] sm:$0xff]
  %v315 = vld [vmem:[%s2 + $0x40] sm:$0xff]
  %v316 = vld [vmem:[%s2 + $0x48] sm:$0xff]
  %v317 = vld [vmem:[%s2 + $0x50] sm:$0xff]
  %v318 = vld [vmem:[%s2 + $0x58] sm:$0xff]
  %v319 = vld [vmem:[%s2 + $0x60] sm:$0xff]
  %v320 = vld [vmem:[%s2 + $0x68] sm:$0xff]
  %v321 = vld [vmem:[%s2 + $0x70] sm:$0xff]
  %v322 = vld [vmem:[%s2 + $0x78] sm:$0xff]
  %323 = vmatprep.subr.mxu0 0.0
  %324 = vmatpush1.msra.mxu0 %v307
  %325 = vmatprep.subr.mxu0 0.0
  %326 = vmatpush1.msra.mxu0 %v308
  %327 = vmatprep.subr.mxu0 0.0
  %328 = vmatpush1.msra.mxu0 %v309
  %329 = vmatprep.subr.mxu0 0.0
  %330 = vmatpush1.msra.mxu0 %v310
  %331 = vmatprep.subr.mxu0 0.0
  %332 = vmatpush1.msra.mxu0 %v311
  %333 = vmatprep.subr.mxu0 0.0
  %334 = vmatpush1.msra.mxu0 %v312
  %335 = vmatprep.subr.mxu0 0.0
  %336 = vmatpush1.msra.mxu0 %v313
  %337 = vmatprep.subr.mxu0 0.0
  %338 = vmatpush1.msra.mxu0 %v314
  %339 = vmatprep.subr.mxu0 0.0
  %340 = vmatpush1.msra.mxu0 %v315
  %341 = vmatprep.subr.mxu0 0.0
  %342 = vmatpush1.msra.mxu0 %v316
  %343 = vmatprep.subr.mxu0 0.0
  %344 = vmatpush1.msra.mxu0 %v317
  %345 = vmatprep.subr.mxu0 0.0
  %346 = vmatpush1.msra.mxu0 %v318
  %347 = vmatprep.subr.mxu0 0.0
  %348 = vmatpush1.msra.mxu0 %v319
  %349 = vmatprep.subr.mxu0 0.0
  %350 = vmatpush1.msra.mxu0 %v320
  %351 = vmatprep.subr.mxu0 0.0
  %352 = vmatpush1.msra.mxu0 %v321
  %353 = vmatprep.subr.mxu0 0.0
  %354 = vmatpush1.msra.mxu0 %v322
  %355 = vmatprep.subr.mxu0 0.0
  %356 = vmatpush1.msra.mxu0 0.0
  %357 = vmatprep.subr.mxu0 0.0
  %358 = vmatpush1.msra.mxu0 0.0
  %359 = vmatprep.subr.mxu0 0.0
  %360 = vmatpush1.msra.mxu0 0.0
  %361 = vmatprep.subr.mxu0 0.0
  %362 = vmatpush1.msra.mxu0 0.0
  %363 = vmatprep.subr.mxu0 0.0
  %364 = vmatpush1.msra.mxu0 0.0
  %365 = vmatprep.subr.mxu0 0.0
  %366 = vmatpush1.msra.mxu0 0.0
  %367 = vmatprep.subr.mxu0 0.0
  %368 = vmatpush1.msra.mxu0 0.0
  %369 = vmatprep.subr.mxu0 0.0
  %370 = vmatpush1.msra.mxu0 0.0
  %371 = vmatprep.subr.mxu0 0.0
  %372 = vmatpush1.msra.mxu0 0.0
  %373 = vmatprep.subr.mxu0 0.0
  %374 = vmatpush1.msra.mxu0 0.0
  %375 = vmatprep.subr.mxu0 0.0
  %376 = vmatpush1.msra.mxu0 0.0
  %377 = vmatprep.subr.mxu0 0.0
  %378 = vmatpush1.msra.mxu0 0.0
  %379 = vmatprep.subr.mxu0 0.0
  %380 = vmatpush1.msra.mxu0 0.0
  %381 = vmatprep.subr.mxu0 0.0
  %382 = vmatpush1.msra.mxu0 0.0
  %383 = vmatprep.subr.mxu0 0.0
  %384 = vmatpush1.msra.mxu0 0.0
  %385 = vmatprep.subr.mxu0 0.0
  %386 = vmatpush1.msra.mxu0 0.0
  %387 = vmatprep.mubr.f32.mxu0 0.0
  %388 = vmatmul.mubr.f32.gmra.mrb[0].mxu0 %v130
  %v389 = vpop.f32.mrb[0].mxu0
  %v390 = vadd.f32 0.0, %v389
  %v391 = vpop.f32.mrb[0].mxu0
  %392 = vmatprep.mubr.f32.mxu0 0.0
  %393 = vmatmul.mubr.f32.gmra.mrb[0].mxu0 %v131
  %v394 = vpop.f32.mrb[0].mxu0
  %v395 = vadd.f32 0.0, %v394
  %v396 = vpop.f32.mrb[0].mxu0
  %397 = vmatprep.mubr.f32.mxu0 0.0
  %398 = vmatmul.mubr.f32.gmra.mrb[0].mxu0 %v132
  %v399 = vpop.f32.mrb[0].mxu0
  %v400 = vadd.f32 0.0, %v399
  %v401 = vpop.f32.mrb[0].mxu0
  %402 = vmatprep.mubr.f32.mxu0 0.0
  %403 = vmatmul.mubr.f32.gmra.mrb[0].mxu0 %v133
  %v404 = vpop.f32.mrb[0].mxu0
  %v405 = vadd.f32 0.0, %v404
  %v406 = vpop.f32.mrb[0].mxu0
  %407 = vmatprep.mubr.f32.mxu0 0.0
  %408 = vmatmul.mubr.f32.gmra.mrb[0].mxu0 %v134
  %v409 = vpop.f32.mrb[0].mxu0
  %v410 = vadd.f32 0.0, %v409
  %v411 = vpop.f32.mrb[0].mxu0
  %412 = vmatprep.mubr.f32.mxu0 0.0
  %413 = vmatmul.mubr.f32.gmra.mrb[0].mxu0 %v135
  %v414 = vpop.f32.mrb[0].mxu0
  %v415 = vadd.f32 0.0, %v414
  %v416 = vpop.f32.mrb[0].mxu0
  %417 = vmatprep.mubr.f32.mxu0 0.0
  %418 = vmatmul.mubr.f32.gmra.mrb[0].mxu0 %v136
  %v419 = vpop.f32.mrb[0].mxu0
  %v420 = vadd.f32 0.0, %v419
  %v421 = vpop.f32.mrb[0].mxu0
  %422 = vmatprep.mubr.f32.mxu0 0.0
  %423 = vmatmul.mubr.f32.gmra.mrb[0].mxu0 %v137
  %v424 = vpop.f32.mrb[0].mxu0
  %v425 = vadd.f32 0.0, %v424
  %v426 = vpop.f32.mrb[0].mxu0
  %427 = vmatprep.mubr.f32.mxu0 0.0
  %428 = vmatmul.mubr.f32.gmra.mrb[0].mxu0 %v138
  %v429 = vpop.f32.mrb[0].mxu0
  %v430 = vadd.f32 0.0, %v429
  %v431 = vpop.f32.mrb[0].mxu0
  %432 = vmatprep.mubr.f32.mxu0 0.0
  %433 = vmatmul.mubr.f32.gmra.mrb[0].mxu0 %v139
  %v434 = vpop.f32.mrb[0].mxu0
  %v435 = vadd.f32 0.0, %v434
  %v436 = vpop.f32.mrb[0].mxu0
  %437 = vmatprep.mubr.f32.mxu0 0.0
  %438 = vmatmul.mubr.f32.gmra.mrb[0].mxu0 %v140
  %v439 = vpop.f32.mrb[0].mxu0
  %v440 = vadd.f32 0.0, %v439
  %v441 = vpop.f32.mrb[0].mxu0
  %442 = vmatprep.mubr.f32.mxu0 0.0
  %443 = vmatmul.mubr.f32.gmra.mrb[0].mxu0 %v141
  %v444 = vpop.f32.mrb[0].mxu0
  %v445 = vadd.f32 0.0, %v444
  %v446 = vpop.f32.mrb[0].mxu0
  %447 = vmatprep.mubr.f32.mxu0 0.0
  %448 = vmatmul.mubr.f32.gmra.mrb[0].mxu0 %v142
  %v449 = vpop.f32.mrb[0].mxu0
  %v450 = vadd.f32 0.0, %v449
  %v451 = vpop.f32.mrb[0].mxu0
  %452 = vmatprep.mubr.f32.mxu0 0.0
  %453 = vmatmul.mubr.f32.gmra.mrb[0].mxu0 %v143
  %v454 = vpop.f32.mrb[0].mxu0
  %v455 = vadd.f32 0.0, %v454
  %v456 = vpop.f32.mrb[0].mxu0
  %457 = vmatprep.mubr.f32.mxu0 0.0
  %458 = vmatmul.mubr.f32.gmra.mrb[0].mxu0 %v144
  %v459 = vpop.f32.mrb[0].mxu0
  %v460 = vadd.f32 0.0, %v459
  %v461 = vpop.f32.mrb[0].mxu0
  %462 = vmatprep.mubr.f32.mxu0 0.0
  %463 = vmatmul.mubr.f32.gmra.mrb[0].mxu0 %v145
  %v464 = vpop.f32.mrb[0].mxu0
  %v465 = vadd.f32 0.0, %v464
  %v466 = vpop.f32.mrb[0].mxu0
  %467 = vdwg.mxu0
  %v468 = vld [vmem:[%s3] sm:$0xff]
  %v469 = vld [vmem:[%s3 + $0x8] sm:$0xff]
  %v470 = vld [vmem:[%s3 + $0x10] sm:$0xff]
  %v471 = vld [vmem:[%s3 + $0x18] sm:$0xff]
  %v472 = vld [vmem:[%s3 + $0x20] sm:$0xff]
  %v473 = vld [vmem:[%s3 + $0x28] sm:$0xff]
  %v474 = vld [vmem:[%s3 + $0x30] sm:$0xff]
  %v475 = vld [vmem:[%s3 + $0x38] sm:$0xff]
  %v476 = vld [vmem:[%s3 + $0x40] sm:$0xff]
  %v477 = vld [vmem:[%s3 + $0x48] sm:$0xff]
  %v478 = vld [vmem:[%s3 + $0x50] sm:$0xff]
  %v479 = vld [vmem:[%s3 + $0x58] sm:$0xff]
  %v480 = vld [vmem:[%s3 + $0x60] sm:$0xff]
  %v481 = vld [vmem:[%s3 + $0x68] sm:$0xff]
  %v482 = vld [vmem:[%s3 + $0x70] sm:$0xff]
  %v483 = vld [vmem:[%s3 + $0x78] sm:$0xff]
  %v484 = vld [vmem:[%s3 + $0x80] sm:$0xff]
  %v485 = vld [vmem:[%s3 + $0x88] sm:$0xff]
  %v486 = vld [vmem:[%s3 + $0x90] sm:$0xff]
  %v487 = vld [vmem:[%s3 + $0x98] sm:$0xff]
  %v488 = vld [vmem:[%s3 + $0xa0] sm:$0xff]
  %v489 = vld [vmem:[%s3 + $0xa8] sm:$0xff]
  %v490 = vld [vmem:[%s3 + $0xb0] sm:$0xff]
  %v491 = vld [vmem:[%s3 + $0xb8] sm:$0xff]
  %v492 = vld [vmem:[%s3 + $0xc0] sm:$0xff]
  %v493 = vld [vmem:[%s3 + $0xc8] sm:$0xff]
  %v494 = vld [vmem:[%s3 + $0xd0] sm:$0xff]
  %v495 = vld [vmem:[%s3 + $0xd8] sm:$0xff]
  %v496 = vld [vmem:[%s3 + $0xe0] sm:$0xff]
  %v497 = vld [vmem:[%s3 + $0xe8] sm:$0xff]
  %v498 = vld [vmem:[%s3 + $0xf0] sm:$0xff]
  %v499 = vld [vmem:[%s3 + $0xf8] sm:$0xff]
  %500 = vmatprep.subr.mxu0 0.0
  %501 = vmatpush1.msra.mxu0 %v468
  %502 = vmatprep.subr.mxu0 0.0
  %503 = vmatpush1.msra.mxu0 %v469
  %504 = vmatprep.subr.mxu0 0.0
  %505 = vmatpush1.msra.mxu0 %v470
  %506 = vmatprep.subr.mxu0 0.0
  %507 = vmatpush1.msra.mxu0 %v471
  %508 = vmatprep.subr.mxu0 0.0
  %509 = vmatpush1.msra.mxu0 %v472
  %510 = vmatprep.subr.mxu0 0.0
  %511 = vmatpush1.msra.mxu0 %v473
  %512 = vmatprep.subr.mxu0 0.0
  %513 = vmatpush1.msra.mxu0 %v474
  %514 = vmatprep.subr.mxu0 0.0
  %515 = vmatpush1.msra.mxu0 %v475
  %516 = vmatprep.subr.mxu0 0.0
  %517 = vmatpush1.msra.mxu0 %v476
  %518 = vmatprep.subr.mxu0 0.0
  %519 = vmatpush1.msra.mxu0 %v477
  %520 = vmatprep.subr.mxu0 0.0
  %521 = vmatpush1.msra.mxu0 %v478
  %522 = vmatprep.subr.mxu0 0.0
  %523 = vmatpush1.msra.mxu0 %v479
  %524 = vmatprep.subr.mxu0 0.0
  %525 = vmatpush1.msra.mxu0 %v480
  %526 = vmatprep.subr.mxu0 0.0
  %527 = vmatpush1.msra.mxu0 %v481
  %528 = vmatprep.subr.mxu0 0.0
  %529 = vmatpush1.msra.mxu0 %v482
  %530 = vmatprep.subr.mxu0 0.0
  %531 = vmatpush1.msra.mxu0 %v483
  %532 = vmatprep.subr.mxu0 0.0
  %533 = vmatpush1.msra.mxu0 %v484
  %534 = vmatprep.subr.mxu0 0.0
  %535 = vmatpush1.msra.mxu0 %v485
  %536 = vmatprep.subr.mxu0 0.0
  %537 = vmatpush1.msra.mxu0 %v486
  %538 = vmatprep.subr.mxu0 0.0
  %539 = vmatpush1.msra.mxu0 %v487
  %540 = vmatprep.subr.mxu0 0.0
  %541 = vmatpush1.msra.mxu0 %v488
  %542 = vmatprep.subr.mxu0 0.0
  %543 = vmatpush1.msra.mxu0 %v489
  %544 = vmatprep.subr.mxu0 0.0
  %545 = vmatpush1.msra.mxu0 %v490
  %546 = vmatprep.subr.mxu0 0.0
  %547 = vmatpush1.msra.mxu0 %v491
  %548 = vmatprep.subr.mxu0 0.0
  %549 = vmatpush1.msra.mxu0 %v492
  %550 = vmatprep.subr.mxu0 0.0
  %551 = vmatpush1.msra.mxu0 %v493
  %552 = vmatprep.subr.mxu0 0.0
  %553 = vmatpush1.msra.mxu0 %v494
  %554 = vmatprep.subr.mxu0 0.0
  %555 = vmatpush1.msra.mxu0 %v495
  %556 = vmatprep.subr.mxu0 0.0
  %557 = vmatpush1.msra.mxu0 %v496
  %558 = vmatprep.subr.mxu0 0.0
  %559 = vmatpush1.msra.mxu0 %v497
  %560 = vmatprep.subr.mxu0 0.0
  %561 = vmatpush1.msra.mxu0 %v498
  %562 = vmatprep.subr.mxu0 0.0
  %563 = vmatpush1.msra.mxu0 %v499
  %564 = vmatprep.mubr.f32.mxu0 %v276
  %565 = vmatmul.mubr.f32.gmra.mrb[0].mxu0 %v275
  %v566 = vpop.f32.mrb[0].mxu0
  %v567 = vadd.f32 0.0, %v566
  %v568 = vpop.f32.mrb[0].mxu0
  %569 = vmatprep.mubr.f32.mxu0 %v278
  %570 = vmatmul.mubr.f32.gmra.mrb[0].mxu0 %v277
  %v571 = vpop.f32.mrb[0].mxu0
  %v572 = vadd.f32 0.0, %v571
  %v573 = vpop.f32.mrb[0].mxu0
  %574 = vmatprep.mubr.f32.mxu0 %v280
  %575 = vmatmul.mubr.f32.gmra.mrb[0].mxu0 %v279
  %v576 = vpop.f32.mrb[0].mxu0
  %v577 = vadd.f32 0.0, %v576
  %v578 = vpop.f32.mrb[0].mxu0
  %579 = vmatprep.mubr.f32.mxu0 %v282
  %580 = vmatmul.mubr.f32.gmra.mrb[0].mxu0 %v281
  %v581 = vpop.f32.mrb[0].mxu0
  %v582 = vadd.f32 0.0, %v581
  %v583 = vpop.f32.mrb[0].mxu0
  %584 = vmatprep.mubr.f32.mxu0 %v284
  %585 = vmatmul.mubr.f32.gmra.mrb[0].mxu0 %v283
  %v586 = vpop.f32.mrb[0].mxu0
  %v587 = vadd.f32 0.0, %v586
  %v588 = vpop.f32.mrb[0].mxu0
  %589 = vmatprep.mubr.f32.mxu0 %v286
  %590 = vmatmul.mubr.f32.gmra.mrb[0].mxu0 %v285
  %v591 = vpop.f32.mrb[0].mxu0
  %v592 = vadd.f32 0.0, %v591
  %v593 = vpop.f32.mrb[0].mxu0
  %594 = vmatprep.mubr.f32.mxu0 %v288
  %595 = vmatmul.mubr.f32.gmra.mrb[0].mxu0 %v287
  %v596 = vpop.f32.mrb[0].mxu0
  %v597 = vadd.f32 0.0, %v596
  %v598 = vpop.f32.mrb[0].mxu0
  %599 = vmatprep.mubr.f32.mxu0 %v290
  %600 = vmatmul.mubr.f32.gmra.mrb[0].mxu0 %v289
  %v601 = vpop.f32.mrb[0].mxu0
  %v602 = vadd.f32 0.0, %v601
  %v603 = vpop.f32.mrb[0].mxu0
  %604 = vmatprep.mubr.f32.mxu0 %v292
  %605 = vmatmul.mubr.f32.gmra.mrb[0].mxu0 %v291
  %v606 = vpop.f32.mrb[0].mxu0
  %v607 = vadd.f32 0.0, %v606
  %v608 = vpop.f32.mrb[0].mxu0
  %609 = vmatprep.mubr.f32.mxu0 %v294
  %610 = vmatmul.mubr.f32.gmra.mrb[0].mxu0 %v293
  %v611 = vpop.f32.mrb[0].mxu0
  %v612 = vadd.f32 0.0, %v611
  %v613 = vpop.f32.mrb[0].mxu0
  %614 = vmatprep.mubr.f32.mxu0 %v296
  %615 = vmatmul.mubr.f32.gmra.mrb[0].mxu0 %v295
  %v616 = vpop.f32.mrb[0].mxu0
  %v617 = vadd.f32 0.0, %v616
  %v618 = vpop.f32.mrb[0].mxu0
  %619 = vmatprep.mubr.f32.mxu0 %v298
  %620 = vmatmul.mubr.f32.gmra.mrb[0].mxu0 %v297
  %v621 = vpop.f32.mrb[0].mxu0
  %v622 = vadd.f32 0.0, %v621
  %v623 = vpop.f32.mrb[0].mxu0
  %624 = vmatprep.mubr.f32.mxu0 %v300
  %625 = vmatmul.mubr.f32.gmra.mrb[0].mxu0 %v299
  %v626 = vpop.f32.mrb[0].mxu0
  %v627 = vadd.f32 0.0, %v626
  %v628 = vpop.f32.mrb[0].mxu0
  %629 = vmatprep.mubr.f32.mxu0 %v302
  %630 = vmatmul.mubr.f32.gmra.mrb[0].mxu0 %v301
  %v631 = vpop.f32.mrb[0].mxu0
  %v632 = vadd.f32 0.0, %v631
  %v633 = vpop.f32.mrb[0].mxu0
  %634 = vmatprep.mubr.f32.mxu0 %v304
  %635 = vmatmul.mubr.f32.gmra.mrb[0].mxu0 %v303
  %v636 = vpop.f32.mrb[0].mxu0
  %v637 = vadd.f32 0.0, %v636
  %v638 = vpop.f32.mrb[0].mxu0
  %639 = vmatprep.mubr.f32.mxu0 %v306
  %640 = vmatmul.mubr.f32.gmra.mrb[0].mxu0 %v305
  %v641 = vpop.f32.mrb[0].mxu0
  %v642 = vadd.f32 0.0, %v641
  %v643 = vpop.f32.mrb[0].mxu0
  %644 = vdwg.mxu0
  %v645 = vld [vmem:[%s4] sm:$0xff]
  %v646 = vld [vmem:[%s4 + $0x8] sm:$0xff]
  %v647 = vld [vmem:[%s4 + $0x10] sm:$0xff]
  %v648 = vld [vmem:[%s4 + $0x18] sm:$0xff]
  %vm649 = vcmask 130048
  %v651 = vsel %vm649, %v567, 0
  %v654 = vsel %vm649, %v572, 0
  %v657 = vsel %vm649, %v577, 0
  %v660 = vsel %vm649, %v582, 0
  %v663 = vsel %vm649, %v587, 0
  %v666 = vsel %vm649, %v592, 0
  %v669 = vsel %vm649, %v597, 0
  %v672 = vsel %vm649, %v602, 0
  %v675 = vsel %vm649, %v607, 0
  %v678 = vsel %vm649, %v612, 0
  %v681 = vsel %vm649, %v617, 0
  %v684 = vsel %vm649, %v622, 0
  %v687 = vsel %vm649, %v627, 0
  %v690 = vsel %vm649, %v632, 0
  %v693 = vsel %vm649, %v637, 0
  %v696 = vsel %vm649, %v642, 0
  %698 = vmatprep.subr.mxu0 0.0
  %699 = vmatpush1.msra.mxu0 %v647
  %700 = vmatprep.subr.mxu0 0.0
  %701 = vmatpush1.msra.mxu0 %v648
  %702 = vmatprep.subr.mxu0 0.0
  %703 = vmatpush1.msra.mxu0 0.0
  %704 = vmatprep.subr.mxu0 0.0
  %705 = vmatpush1.msra.mxu0 0.0
  %706 = vmatprep.subr.mxu0 0.0
  %707 = vmatpush1.msra.mxu0 0.0
  %708 = vmatprep.subr.mxu0 0.0
  %709 = vmatpush1.msra.mxu0 0.0
  %710 = vmatprep.subr.mxu0 0.0
  %711 = vmatpush1.msra.mxu0 0.0
  %712 = vmatprep.subr.mxu0 0.0
  %713 = vmatpush1.msra.mxu0 0.0
  %714 = vmatprep.subr.mxu0 0.0
  %715 = vmatpush1.msra.mxu0 0.0
  %716 = vmatprep.subr.mxu0 0.0
  %717 = vmatpush1.msra.mxu0 0.0
  %718 = vmatprep.subr.mxu0 0.0
  %719 = vmatpush1.msra.mxu0 0.0
  %720 = vmatprep.subr.mxu0 0.0
  %721 = vmatpush1.msra.mxu0 0.0
  %722 = vmatprep.subr.mxu0 0.0
  %723 = vmatpush1.msra.mxu0 0.0
  %724 = vmatprep.subr.mxu0 0.0
  %725 = vmatpush1.msra.mxu0 0.0
  %726 = vmatprep.subr.mxu0 0.0
  %727 = vmatpush1.msra.mxu0 0.0
  %728 = vmatprep.subr.mxu0 0.0
  %729 = vmatpush1.msra.mxu0 0.0
  %730 = vmatprep.subr.mxu0 0.0
  %731 = vmatpush1.msra.mxu0 0.0
  %732 = vmatprep.subr.mxu0 0.0
  %733 = vmatpush1.msra.mxu0 0.0
  %734 = vmatprep.subr.mxu0 0.0
  %735 = vmatpush1.msra.mxu0 0.0
  %736 = vmatprep.subr.mxu0 0.0
  %737 = vmatpush1.msra.mxu0 0.0
  %738 = vmatprep.subr.mxu0 0.0
  %739 = vmatpush1.msra.mxu0 0.0
  %740 = vmatprep.subr.mxu0 0.0
  %741 = vmatpush1.msra.mxu0 0.0
  %742 = vmatprep.subr.mxu0 0.0
  %743 = vmatpush1.msra.mxu0 0.0
  %744 = vmatprep.subr.mxu0 0.0
  %745 = vmatpush1.msra.mxu0 0.0
  %746 = vmatprep.subr.mxu0 0.0
  %747 = vmatpush1.msra.mxu0 0.0
  %748 = vmatprep.subr.mxu0 0.0
  %749 = vmatpush1.msra.mxu0 0.0
  %750 = vmatprep.subr.mxu0 0.0
  %751 = vmatpush1.msra.mxu0 0.0
  %752 = vmatprep.subr.mxu0 0.0
  %753 = vmatpush1.msra.mxu0 0.0
  %754 = vmatprep.subr.mxu0 0.0
  %755 = vmatpush1.msra.mxu0 0.0
  %756 = vmatprep.subr.mxu0 0.0
  %757 = vmatpush1.msra.mxu0 0.0
  %758 = vmatprep.subr.mxu0 0.0
  %759 = vmatpush1.msra.mxu0 0.0
  %760 = vmatprep.subr.mxu0 0.0
  %761 = vmatpush1.msra.mxu0 0.0
  %762 = vmatprep.mubr.f32.mxu0 0.0
  %763 = vmatmul.mubr.f32.gmra.mrb[0].mxu0 %v651
  %v764 = vpop.f32.mrb[0].mxu0
  %v765 = vadd.f32 0.0, %v764
  %v766 = vpop.f32.mrb[0].mxu0
  %767 = vmatprep.mubr.f32.mxu0 0.0
  %768 = vmatmul.mubr.f32.gmra.mrb[0].mxu0 %v654
  %v769 = vpop.f32.mrb[0].mxu0
  %v770 = vadd.f32 0.0, %v769
  %v771 = vpop.f32.mrb[0].mxu0
  %772 = vmatprep.mubr.f32.mxu0 0.0
  %773 = vmatmul.mubr.f32.gmra.mrb[0].mxu0 %v657
  %v774 = vpop.f32.mrb[0].mxu0
  %v775 = vadd.f32 0.0, %v774
  %v776 = vpop.f32.mrb[0].mxu0
  %777 = vmatprep.mubr.f32.mxu0 0.0
  %778 = vmatmul.mubr.f32.gmra.mrb[0].mxu0 %v660
  %v779 = vpop.f32.mrb[0].mxu0
  %v780 = vadd.f32 0.0, %v779
  %v781 = vpop.f32.mrb[0].mxu0
  %782 = vmatprep.mubr.f32.mxu0 0.0
  %783 = vmatmul.mubr.f32.gmra.mrb[0].mxu0 %v663
  %v784 = vpop.f32.mrb[0].mxu0
  %v785 = vadd.f32 0.0, %v784
  %v786 = vpop.f32.mrb[0].mxu0
  %787 = vmatprep.mubr.f32.mxu0 0.0
  %788 = vmatmul.mubr.f32.gmra.mrb[0].mxu0 %v666
  %v789 = vpop.f32.mrb[0].mxu0
  %v790 = vadd.f32 0.0, %v789
  %v791 = vpop.f32.mrb[0].mxu0
  %792 = vmatprep.mubr.f32.mxu0 0.0
  %793 = vmatmul.mubr.f32.gmra.mrb[0].mxu0 %v669
  %v794 = vpop.f32.mrb[0].mxu0
  %v795 = vadd.f32 0.0, %v794
  %v796 = vpop.f32.mrb[0].mxu0
  %797 = vmatprep.mubr.f32.mxu0 0.0
  %798 = vmatmul.mubr.f32.gmra.mrb[0].mxu0 %v672
  %v799 = vpop.f32.mrb[0].mxu0
  %v800 = vadd.f32 0.0, %v799
  %v801 = vpop.f32.mrb[0].mxu0
  %802 = vmatprep.mubr.f32.mxu0 0.0
  %803 = vmatmul.mubr.f32.gmra.mrb[0].mxu0 %v675
  %v804 = vpop.f32.mrb[0].mxu0
  %v805 = vadd.f32 0.0, %v804
  %v806 = vpop.f32.mrb[0].mxu0
  %807 = vmatprep.mubr.f32.mxu0 0.0
  %808 = vmatmul.mubr.f32.gmra.mrb[0].mxu0 %v678
  %v809 = vpop.f32.mrb[0].mxu0
  %v810 = vadd.f32 0.0, %v809
  %v811 = vpop.f32.mrb[0].mxu0
  %812 = vmatprep.mubr.f32.mxu0 0.0
  %813 = vmatmul.mubr.f32.gmra.mrb[0].mxu0 %v681
  %v814 = vpop.f32.mrb[0].mxu0
  %v815 = vadd.f32 0.0, %v814
  %v816 = vpop.f32.mrb[0].mxu0
  %817 = vmatprep.mubr.f32.mxu0 0.0
  %818 = vmatmul.mubr.f32.gmra.mrb[0].mxu0 %v684
  %v819 = vpop.f32.mrb[0].mxu0
  %v820 = vadd.f32 0.0, %v819
  %v821 = vpop.f32.mrb[0].mxu0
  %822 = vmatprep.mubr.f32.mxu0 0.0
  %823 = vmatmul.mubr.f32.gmra.mrb[0].mxu0 %v687
  %v824 = vpop.f32.mrb[0].mxu0
  %v825 = vadd.f32 0.0, %v824
  %v826 = vpop.f32.mrb[0].mxu0
  %827 = vmatprep.mubr.f32.mxu0 0.0
  %828 = vmatmul.mubr.f32.gmra.mrb[0].mxu0 %v690
  %v829 = vpop.f32.mrb[0].mxu0
  %v830 = vadd.f32 0.0, %v829
  %v831 = vpop.f32.mrb[0].mxu0
  %832 = vmatprep.mubr.f32.mxu0 0.0
  %833 = vmatmul.mubr.f32.gmra.mrb[0].mxu0 %v693
  %v834 = vpop.f32.mrb[0].mxu0
  %v835 = vadd.f32 0.0, %v834
  %v836 = vpop.f32.mrb[0].mxu0
  %837 = vmatprep.mubr.f32.mxu0 0.0
  %838 = vmatmul.mubr.f32.gmra.mrb[0].mxu0 %v696
  %v839 = vpop.f32.mrb[0].mxu0
  %v840 = vadd.f32 0.0, %v839
  %v841 = vpop.f32.mrb[0].mxu0
  %842 = vdwg.mxu0
  %v844 = vsel %vm649, %v390, 0
  %v847 = vsel %vm649, %v395, 0
  %v850 = vsel %vm649, %v400, 0
  %v853 = vsel %vm649, %v405, 0
  %v856 = vsel %vm649, %v410, 0
  %v859 = vsel %vm649, %v415, 0
  %v862 = vsel %vm649, %v420, 0
  %v865 = vsel %vm649, %v425, 0
  %v868 = vsel %vm649, %v430, 0
  %v871 = vsel %vm649, %v435, 0
  %v874 = vsel %vm649, %v440, 0
  %v877 = vsel %vm649, %v445, 0
  %v880 = vsel %vm649, %v450, 0
  %v883 = vsel %vm649, %v455, 0
  %v886 = vsel %vm649, %v460, 0
  %v889 = vsel %vm649, %v465, 0
  %891 = vmatprep.subr.mxu0 0.0
  %892 = vmatpush1.msra.mxu0 %v645
  %893 = vmatprep.subr.mxu0 0.0
  %894 = vmatpush1.msra.mxu0 %v646
  %895 = vmatprep.subr.mxu0 0.0
  %896 = vmatpush1.msra.mxu0 0.0
  %897 = vmatprep.subr.mxu0 0.0
  %898 = vmatpush1.msra.mxu0 0.0
  %899 = vmatprep.subr.mxu0 0.0
  %900 = vmatpush1.msra.mxu0 0.0
  %901 = vmatprep.subr.mxu0 0.0
  %902 = vmatpush1.msra.mxu0 0.0
  %903 = vmatprep.subr.mxu0 0.0
  %904 = vmatpush1.msra.mxu0 0.0
  %905 = vmatprep.subr.mxu0 0.0
  %906 = vmatpush1.msra.mxu0 0.0
  %907 = vmatprep.subr.mxu0 0.0
  %908 = vmatpush1.msra.mxu0 0.0
  %909 = vmatprep.subr.mxu0 0.0
  %910 = vmatpush1.msra.mxu0 0.0
  %911 = vmatprep.subr.mxu0 0.0
  %912 = vmatpush1.msra.mxu0 0.0
  %913 = vmatprep.subr.mxu0 0.0
  %914 = vmatpush1.msra.mxu0 0.0
  %915 = vmatprep.subr.mxu0 0.0
  %916 = vmatpush1.msra.mxu0 0.0
  %917 = vmatprep.subr.mxu0 0.0
  %918 = vmatpush1.msra.mxu0 0.0
  %919 = vmatprep.subr.mxu0 0.0
  %920 = vmatpush1.msra.mxu0 0.0
  %921 = vmatprep.subr.mxu0 0.0
  %922 = vmatpush1.msra.mxu0 0.0
  %923 = vmatprep.subr.mxu0 0.0
  %924 = vmatpush1.msra.mxu0 0.0
  %925 = vmatprep.subr.mxu0 0.0
  %926 = vmatpush1.msra.mxu0 0.0
  %927 = vmatprep.subr.mxu0 0.0
  %928 = vmatpush1.msra.mxu0 0.0
  %929 = vmatprep.subr.mxu0 0.0
  %930 = vmatpush1.msra.mxu0 0.0
  %931 = vmatprep.subr.mxu0 0.0
  %932 = vmatpush1.msra.mxu0 0.0
  %933 = vmatprep.subr.mxu0 0.0
  %934 = vmatpush1.msra.mxu0 0.0
  %935 = vmatprep.subr.mxu0 0.0
  %936 = vmatpush1.msra.mxu0 0.0
  %937 = vmatprep.subr.mxu0 0.0
  %938 = vmatpush1.msra.mxu0 0.0
  %939 = vmatprep.subr.mxu0 0.0
  %940 = vmatpush1.msra.mxu0 0.0
  %941 = vmatprep.subr.mxu0 0.0
  %942 = vmatpush1.msra.mxu0 0.0
  %943 = vmatprep.subr.mxu0 0.0
  %944 = vmatpush1.msra.mxu0 0.0
  %945 = vmatprep.subr.mxu0 0.0
  %946 = vmatpush1.msra.mxu0 0.0
  %947 = vmatprep.subr.mxu0 0.0
  %948 = vmatpush1.msra.mxu0 0.0
  %949 = vmatprep.subr.mxu0 0.0
  %950 = vmatpush1.msra.mxu0 0.0
  %951 = vmatprep.subr.mxu0 0.0
  %952 = vmatpush1.msra.mxu0 0.0
  %953 = vmatprep.subr.mxu0 0.0
  %954 = vmatpush1.msra.mxu0 0.0
  %955 = vmatprep.mubr.f32.mxu0 0.0
  %956 = vmatmul.mubr.f32.gmra.mrb[0].mxu0 %v844
  %v957 = vpop.f32.mrb[0].mxu0
  %v958 = vadd.f32 %v765, %v957
  %v959 = vpop.f32.mrb[0].mxu0
  %960 = vmatprep.mubr.f32.mxu0 0.0
  %961 = vmatmul.mubr.f32.gmra.mrb[0].mxu0 %v847
  %v962 = vpop.f32.mrb[0].mxu0
  %v963 = vadd.f32 %v770, %v962
  %v964 = vpop.f32.mrb[0].mxu0
  %965 = vmatprep.mubr.f32.mxu0 0.0
  %966 = vmatmul.mubr.f32.gmra.mrb[0].mxu0 %v850
  %v967 = vpop.f32.mrb[0].mxu0
  %v968 = vadd.f32 %v775, %v967
  %v969 = vpop.f32.mrb[0].mxu0
  %970 = vmatprep.mubr.f32.mxu0 0.0
  %971 = vmatmul.mubr.f32.gmra.mrb[0].mxu0 %v853
  %v972 = vpop.f32.mrb[0].mxu0
  %v973 = vadd.f32 %v780, %v972
  %v974 = vpop.f32.mrb[0].mxu0
  %975 = vmatprep.mubr.f32.mxu0 0.0
  %976 = vmatmul.mubr.f32.gmra.mrb[0].mxu0 %v856
  %v977 = vpop.f32.mrb[0].mxu0
  %v978 = vadd.f32 %v785, %v977
  %v979 = vpop.f32.mrb[0].mxu0
  %980 = vmatprep.mubr.f32.mxu0 0.0
  %981 = vmatmul.mubr.f32.gmra.mrb[0].mxu0 %v859
  %v982 = vpop.f32.mrb[0].mxu0
  %v983 = vadd.f32 %v790, %v982
  %v984 = vpop.f32.mrb[0].mxu0
  %985 = vmatprep.mubr.f32.mxu0 0.0
  %986 = vmatmul.mubr.f32.gmra.mrb[0].mxu0 %v862
  %v987 = vpop.f32.mrb[0].mxu0
  %v988 = vadd.f32 %v795, %v987
  %v989 = vpop.f32.mrb[0].mxu0
  %990 = vmatprep.mubr.f32.mxu0 0.0
  %991 = vmatmul.mubr.f32.gmra.mrb[0].mxu0 %v865
  %v992 = vpop.f32.mrb[0].mxu0
  %v993 = vadd.f32 %v800, %v992
  %v994 = vpop.f32.mrb[0].mxu0
  %995 = vmatprep.mubr.f32.mxu0 0.0
  %996 = vmatmul.mubr.f32.gmra.mrb[0].mxu0 %v868
  %v997 = vpop.f32.mrb[0].mxu0
  %v998 = vadd.f32 %v805, %v997
  %v999 = vpop.f32.mrb[0].mxu0
  %1000 = vmatprep.mubr.f32.mxu0 0.0
  %1001 = vmatmul.mubr.f32.gmra.mrb[0].mxu0 %v871
  %v1002 = vpop.f32.mrb[0].mxu0
  %v1003 = vadd.f32 %v810, %v1002
  %v1004 = vpop.f32.mrb[0].mxu0
  %1005 = vmatprep.mubr.f32.mxu0 0.0
  %1006 = vmatmul.mubr.f32.gmra.mrb[0].mxu0 %v874
  %v1007 = vpop.f32.mrb[0].mxu0
  %v1008 = vadd.f32 %v815, %v1007
  %v1009 = vpop.f32.mrb[0].mxu0
  %1010 = vmatprep.mubr.f32.mxu0 0.0
  %1011 = vmatmul.mubr.f32.gmra.mrb[0].mxu0 %v877
  %v1012 = vpop.f32.mrb[0].mxu0
  %v1013 = vadd.f32 %v820, %v1012
  %v1014 = vpop.f32.mrb[0].mxu0
  %1015 = vmatprep.mubr.f32.mxu0 0.0
  %1016 = vmatmul.mubr.f32.gmra.mrb[0].mxu0 %v880
  %v1017 = vpop.f32.mrb[0].mxu0
  %v1018 = vadd.f32 %v825, %v1017
  %v1019 = vpop.f32.mrb[0].mxu0
  %1020 = vmatprep.mubr.f32.mxu0 0.0
  %1021 = vmatmul.mubr.f32.gmra.mrb[0].mxu0 %v883
  %v1022 = vpop.f32.mrb[0].mxu0
  %v1023 = vadd.f32 %v830, %v1022
  %v1024 = vpop.f32.mrb[0].mxu0
  %1025 = vmatprep.mubr.f32.mxu0 0.0
  %1026 = vmatmul.mubr.f32.gmra.mrb[0].mxu0 %v886
  %v1027 = vpop.f32.mrb[0].mxu0
  %v1028 = vadd.f32 %v835, %v1027
  %v1029 = vpop.f32.mrb[0].mxu0
  %1030 = vmatprep.mubr.f32.mxu0 0.0
  %1031 = vmatmul.mubr.f32.gmra.mrb[0].mxu0 %v889
  %v1032 = vpop.f32.mrb[0].mxu0
  %v1033 = vadd.f32 %v840, %v1032
  %v1034 = vpop.f32.mrb[0].mxu0
  %1035 = vdwg.mxu0
  %v1036 = vld [vmem:[%s5] sm:$0x1]
  %v1038 = vlaneseq
  %v1039 = vshrl.u32 %v1038, 7
  %v1040 = vsub.s32 0, %v1039
  %v1041 = vrot.slane %v1036, %v1040
  %v1043 = vadd.f32 %v958, %v1041
  %v1044 = vadd.f32 %v963, %v1041
  %v1045 = vadd.f32 %v968, %v1041
  %v1046 = vadd.f32 %v973, %v1041
  %v1047 = vadd.f32 %v978, %v1041
  %v1048 = vadd.f32 %v983, %v1041
  %v1049 = vadd.f32 %v988, %v1041
  %v1050 = vadd.f32 %v993, %v1041
  %v1051 = vadd.f32 %v998, %v1041
  %v1052 = vadd.f32 %v1003, %v1041
  %v1053 = vadd.f32 %v1008, %v1041
  %v1054 = vadd.f32 %v1013, %v1041
  %v1055 = vadd.f32 %v1018, %v1041
  %v1056 = vadd.f32 %v1023, %v1041
  %v1057 = vadd.f32 %v1028, %v1041
  %v1058 = vadd.f32 %v1033, %v1041
  %v1059 = vmax.f32 %v1043, 0.0
  %v1060 = vmax.f32 %v1044, 0.0
  %v1061 = vmax.f32 %v1045, 0.0
  %v1062 = vmax.f32 %v1046, 0.0
  %v1063 = vmax.f32 %v1047, 0.0
  %v1064 = vmax.f32 %v1048, 0.0
  %v1065 = vmax.f32 %v1049, 0.0
  %v1066 = vmax.f32 %v1050, 0.0
  %v1067 = vmax.f32 %v1051, 0.0
  %v1068 = vmax.f32 %v1052, 0.0
  %v1069 = vmax.f32 %v1053, 0.0
  %v1070 = vmax.f32 %v1054, 0.0
  %v1071 = vmax.f32 %v1055, 0.0
  %v1072 = vmax.f32 %v1056, 0.0
  %v1073 = vmax.f32 %v1057, 0.0
  %v1074 = vmax.f32 %v1058, 0.0
  %v1075 = vld [vmem:[%s6] sm:$0xff]
  %v1076 = vld [vmem:[%s6 + $0x8] sm:$0xff]
  %v1077 = vld [vmem:[%s6 + $0x10] sm:$0xff]
  %v1078 = vld [vmem:[%s6 + $0x18] sm:$0xff]
  %v1079 = vld [vmem:[%s7] sm:$0x1]
  %v1081 = vlaneseq
  %v1082 = vshrl.u32 %v1081, 7
  %v1083 = vsub.s32 0, %v1082
  %v1084 = vrot.slane %v1079, %v1083
  %vm1086 = vcmask 261120
  %v1088 = vsel %vm1086, %v1059, 0
  %v1091 = vsel %vm1086, %v1060, 0
  %v1094 = vsel %vm1086, %v1061, 0
  %v1097 = vsel %vm1086, %v1062, 0
  %v1100 = vsel %vm1086, %v1063, 0
  %v1103 = vsel %vm1086, %v1064, 0
  %v1106 = vsel %vm1086, %v1065, 0
  %v1109 = vsel %vm1086, %v1066, 0
  %v1112 = vsel %vm1086, %v1067, 0
  %v1115 = vsel %vm1086, %v1068, 0
  %v1118 = vsel %vm1086, %v1069, 0
  %v1121 = vsel %vm1086, %v1070, 0
  %v1124 = vsel %vm1086, %v1071, 0
  %v1127 = vsel %vm1086, %v1072, 0
  %v1130 = vsel %vm1086, %v1073, 0
  %v1133 = vsel %vm1086, %v1074, 0
  %1135 = vmatprep.subr.mxu0 0.0
  %1136 = vmatpush1.msra.mxu0 %v1075
  %1137 = vmatprep.subr.mxu0 0.0
  %1138 = vmatpush1.msra.mxu0 %v1076
  %1139 = vmatprep.subr.mxu0 0.0
  %1140 = vmatpush1.msra.mxu0 %v1077
  %1141 = vmatprep.subr.mxu0 0.0
  %1142 = vmatpush1.msra.mxu0 %v1078
  %1143 = vmatprep.subr.mxu0 0.0
  %1144 = vmatpush1.msra.mxu0 0.0
  %1145 = vmatprep.subr.mxu0 0.0
  %1146 = vmatpush1.msra.mxu0 0.0
  %1147 = vmatprep.subr.mxu0 0.0
  %1148 = vmatpush1.msra.mxu0 0.0
  %1149 = vmatprep.subr.mxu0 0.0
  %1150 = vmatpush1.msra.mxu0 0.0
  %1151 = vmatprep.subr.mxu0 0.0
  %1152 = vmatpush1.msra.mxu0 0.0
  %1153 = vmatprep.subr.mxu0 0.0
  %1154 = vmatpush1.msra.mxu0 0.0
  %1155 = vmatprep.subr.mxu0 0.0
  %1156 = vmatpush1.msra.mxu0 0.0
  %1157 = vmatprep.subr.mxu0 0.0
  %1158 = vmatpush1.msra.mxu0 0.0
  %1159 = vmatprep.subr.mxu0 0.0
  %1160 = vmatpush1.msra.mxu0 0.0
  %1161 = vmatprep.subr.mxu0 0.0
  %1162 = vmatpush1.msra.mxu0 0.0
  %1163 = vmatprep.subr.mxu0 0.0
  %1164 = vmatpush1.msra.mxu0 0.0
  %1165 = vmatprep.subr.mxu0 0.0
  %1166 = vmatpush1.msra.mxu0 0.0
  %1167 = vmatprep.subr.mxu0 0.0
  %1168 = vmatpush1.msra.mxu0 0.0
  %1169 = vmatprep.subr.mxu0 0.0
  %1170 = vmatpush1.msra.mxu0 0.0
  %1171 = vmatprep.subr.mxu0 0.0
  %1172 = vmatpush1.msra.mxu0 0.0
  %1173 = vmatprep.subr.mxu0 0.0
  %1174 = vmatpush1.msra.mxu0 0.0
  %1175 = vmatprep.subr.mxu0 0.0
  %1176 = vmatpush1.msra.mxu0 0.0
  %1177 = vmatprep.subr.mxu0 0.0
  %1178 = vmatpush1.msra.mxu0 0.0
  %1179 = vmatprep.subr.mxu0 0.0
  %1180 = vmatpush1.msra.mxu0 0.0
  %1181 = vmatprep.subr.mxu0 0.0
  %1182 = vmatpush1.msra.mxu0 0.0
  %1183 = vmatprep.subr.mxu0 0.0
  %1184 = vmatpush1.msra.mxu0 0.0
  %1185 = vmatprep.subr.mxu0 0.0
  %1186 = vmatpush1.msra.mxu0 0.0
  %1187 = vmatprep.subr.mxu0 0.0
  %1188 = vmatpush1.msra.mxu0 0.0
  %1189 = vmatprep.subr.mxu0 0.0
  %1190 = vmatpush1.msra.mxu0 0.0
  %1191 = vmatprep.subr.mxu0 0.0
  %1192 = vmatpush1.msra.mxu0 0.0
  %1193 = vmatprep.subr.mxu0 0.0
  %1194 = vmatpush1.msra.mxu0 0.0
  %1195 = vmatprep.subr.mxu0 0.0
  %1196 = vmatpush1.msra.mxu0 0.0
  %1197 = vmatprep.subr.mxu0 0.0
  %1198 = vmatpush1.msra.mxu0 0.0
  %1199 = vmatprep.mubr.f32.mxu0 0.0
  %1200 = vmatmul.mubr.f32.gmra.mrb[0].mxu0 %v1088
  %v1201 = vpop.f32.mrb[0].mxu0
  %v1202 = vadd.f32 %v1084, %v1201
  %v1203 = vpop.f32.mrb[0].mxu0
  %1204 = vmatprep.mubr.f32.mxu0 0.0
  %1205 = vmatmul.mubr.f32.gmra.mrb[0].mxu0 %v1091
  %v1206 = vpop.f32.mrb[0].mxu0
  %v1207 = vadd.f32 %v1084, %v1206
  %v1208 = vpop.f32.mrb[0].mxu0
  %1209 = vmatprep.mubr.f32.mxu0 0.0
  %1210 = vmatmul.mubr.f32.gmra.mrb[0].mxu0 %v1094
  %v1211 = vpop.f32.mrb[0].mxu0
  %v1212 = vadd.f32 %v1084, %v1211
  %v1213 = vpop.f32.mrb[0].mxu0
  %1214 = vmatprep.mubr.f32.mxu0 0.0
  %1215 = vmatmul.mubr.f32.gmra.mrb[0].mxu0 %v1097
  %v1216 = vpop.f32.mrb[0].mxu0
  %v1217 = vadd.f32 %v1084, %v1216
  %v1218 = vpop.f32.mrb[0].mxu0
  %1219 = vmatprep.mubr.f32.mxu0 0.0
  %1220 = vmatmul.mubr.f32.gmra.mrb[0].mxu0 %v1100
  %v1221 = vpop.f32.mrb[0].mxu0
  %v1222 = vadd.f32 %v1084, %v1221
  %v1223 = vpop.f32.mrb[0].mxu0
  %1224 = vmatprep.mubr.f32.mxu0 0.0
  %1225 = vmatmul.mubr.f32.gmra.mrb[0].mxu0 %v1103
  %v1226 = vpop.f32.mrb[0].mxu0
  %v1227 = vadd.f32 %v1084, %v1226
  %v1228 = vpop.f32.mrb[0].mxu0
  %1229 = vmatprep.mubr.f32.mxu0 0.0
  %1230 = vmatmul.mubr.f32.gmra.mrb[0].mxu0 %v1106
  %v1231 = vpop.f32.mrb[0].mxu0
  %v1232 = vadd.f32 %v1084, %v1231
  %v1233 = vpop.f32.mrb[0].mxu0
  %1234 = vmatprep.mubr.f32.mxu0 0.0
  %1235 = vmatmul.mubr.f32.gmra.mrb[0].mxu0 %v1109
  %v1236 = vpop.f32.mrb[0].mxu0
  %v1237 = vadd.f32 %v1084, %v1236
  %v1238 = vpop.f32.mrb[0].mxu0
  %1239 = vmatprep.mubr.f32.mxu0 0.0
  %1240 = vmatmul.mubr.f32.gmra.mrb[0].mxu0 %v1112
  %v1241 = vpop.f32.mrb[0].mxu0
  %v1242 = vadd.f32 %v1084, %v1241
  %v1243 = vpop.f32.mrb[0].mxu0
  %1244 = vmatprep.mubr.f32.mxu0 0.0
  %1245 = vmatmul.mubr.f32.gmra.mrb[0].mxu0 %v1115
  %v1246 = vpop.f32.mrb[0].mxu0
  %v1247 = vadd.f32 %v1084, %v1246
  %v1248 = vpop.f32.mrb[0].mxu0
  %1249 = vmatprep.mubr.f32.mxu0 0.0
  %1250 = vmatmul.mubr.f32.gmra.mrb[0].mxu0 %v1118
  %v1251 = vpop.f32.mrb[0].mxu0
  %v1252 = vadd.f32 %v1084, %v1251
  %v1253 = vpop.f32.mrb[0].mxu0
  %1254 = vmatprep.mubr.f32.mxu0 0.0
  %1255 = vmatmul.mubr.f32.gmra.mrb[0].mxu0 %v1121
  %v1256 = vpop.f32.mrb[0].mxu0
  %v1257 = vadd.f32 %v1084, %v1256
  %v1258 = vpop.f32.mrb[0].mxu0
  %1259 = vmatprep.mubr.f32.mxu0 0.0
  %1260 = vmatmul.mubr.f32.gmra.mrb[0].mxu0 %v1124
  %v1261 = vpop.f32.mrb[0].mxu0
  %v1262 = vadd.f32 %v1084, %v1261
  %v1263 = vpop.f32.mrb[0].mxu0
  %1264 = vmatprep.mubr.f32.mxu0 0.0
  %1265 = vmatmul.mubr.f32.gmra.mrb[0].mxu0 %v1127
  %v1266 = vpop.f32.mrb[0].mxu0
  %v1267 = vadd.f32 %v1084, %v1266
  %v1268 = vpop.f32.mrb[0].mxu0
  %1269 = vmatprep.mubr.f32.mxu0 0.0
  %1270 = vmatmul.mubr.f32.gmra.mrb[0].mxu0 %v1130
  %v1271 = vpop.f32.mrb[0].mxu0
  %v1272 = vadd.f32 %v1084, %v1271
  %v1273 = vpop.f32.mrb[0].mxu0
  %1274 = vmatprep.mubr.f32.mxu0 0.0
  %1275 = vmatmul.mubr.f32.gmra.mrb[0].mxu0 %v1133
  %v1276 = vpop.f32.mrb[0].mxu0
  %v1277 = vadd.f32 %v1084, %v1276
  %v1278 = vpop.f32.mrb[0].mxu0
  %1279 = vdwg.mxu0
  %v1280 = vmax.f32 %v1202, 0.0
  %v1281 = vmax.f32 %v1207, 0.0
  %v1282 = vmax.f32 %v1212, 0.0
  %v1283 = vmax.f32 %v1217, 0.0
  %v1284 = vmax.f32 %v1222, 0.0
  %v1285 = vmax.f32 %v1227, 0.0
  %v1286 = vmax.f32 %v1232, 0.0
  %v1287 = vmax.f32 %v1237, 0.0
  %v1288 = vmax.f32 %v1242, 0.0
  %v1289 = vmax.f32 %v1247, 0.0
  %v1290 = vmax.f32 %v1252, 0.0
  %v1291 = vmax.f32 %v1257, 0.0
  %v1292 = vmax.f32 %v1262, 0.0
  %v1293 = vmax.f32 %v1267, 0.0
  %v1294 = vmax.f32 %v1272, 0.0
  %v1295 = vmax.f32 %v1277, 0.0
  %v1296 = vld [vmem:[%s8] sm:$0x1]
  %v1298 = vlaneseq
  %v1299 = vshrl.u32 %v1298, 7
  %v1300 = vsub.s32 0, %v1299
  %v1301 = vrot.slane %v1296, %v1300
  %v1303 = vmul.f32 %v1280, %v1301
  %v1304 = vmul.f32 %v1281, %v1301
  %v1305 = vmul.f32 %v1282, %v1301
  %v1306 = vmul.f32 %v1283, %v1301
  %v1307 = vmul.f32 %v1284, %v1301
  %v1308 = vmul.f32 %v1285, %v1301
  %v1309 = vmul.f32 %v1286, %v1301
  %v1310 = vmul.f32 %v1287, %v1301
  %v1311 = vmul.f32 %v1288, %v1301
  %v1312 = vmul.f32 %v1289, %v1301
  %v1313 = vmul.f32 %v1290, %v1301
  %v1314 = vmul.f32 %v1291, %v1301
  %v1315 = vmul.f32 %v1292, %v1301
  %v1316 = vmul.f32 %v1293, %v1301
  %v1317 = vmul.f32 %v1294, %v1301
  %v1318 = vmul.f32 %v1295, %v1301
  %v1319 = vsel %vm649, %v1303, 0.0
  %1320 = vadd.xlane.f32.xlu0 %v1319
  %v1321 = vpop.xlane.xlu0 %1320
  %v1322 = vsel %vm649, %v1304, 0.0
  %1323 = vadd.xlane.f32.xlu0 %v1322
  %v1324 = vpop.xlane.xlu0 %1323
  %v1325 = vsel %vm649, %v1305, 0.0
  %1326 = vadd.xlane.f32.xlu0 %v1325
  %v1327 = vpop.xlane.xlu0 %1326
  %v1328 = vsel %vm649, %v1306, 0.0
  %1329 = vadd.xlane.f32.xlu0 %v1328
  %v1330 = vpop.xlane.xlu0 %1329
  %v1331 = vsel %vm649, %v1307, 0.0
  %1332 = vadd.xlane.f32.xlu0 %v1331
  %v1333 = vpop.xlane.xlu0 %1332
  %v1334 = vsel %vm649, %v1308, 0.0
  %1335 = vadd.xlane.f32.xlu0 %v1334
  %v1336 = vpop.xlane.xlu0 %1335
  %v1337 = vsel %vm649, %v1309, 0.0
  %1338 = vadd.xlane.f32.xlu0 %v1337
  %v1339 = vpop.xlane.xlu0 %1338
  %v1340 = vsel %vm649, %v1310, 0.0
  %1341 = vadd.xlane.f32.xlu0 %v1340
  %v1342 = vpop.xlane.xlu0 %1341
  %v1343 = vsel %vm649, %v1311, 0.0
  %1344 = vadd.xlane.f32.xlu0 %v1343
  %v1345 = vpop.xlane.xlu0 %1344
  %v1346 = vsel %vm649, %v1312, 0.0
  %1347 = vadd.xlane.f32.xlu0 %v1346
  %v1348 = vpop.xlane.xlu0 %1347
  %v1349 = vsel %vm649, %v1313, 0.0
  %1350 = vadd.xlane.f32.xlu0 %v1349
  %v1351 = vpop.xlane.xlu0 %1350
  %v1352 = vsel %vm649, %v1314, 0.0
  %1353 = vadd.xlane.f32.xlu0 %v1352
  %v1354 = vpop.xlane.xlu0 %1353
  %v1355 = vsel %vm649, %v1315, 0.0
  %1356 = vadd.xlane.f32.xlu0 %v1355
  %v1357 = vpop.xlane.xlu0 %1356
  %v1358 = vsel %vm649, %v1316, 0.0
  %1359 = vadd.xlane.f32.xlu0 %v1358
  %v1360 = vpop.xlane.xlu0 %1359
  %v1361 = vsel %vm649, %v1317, 0.0
  %1362 = vadd.xlane.f32.xlu0 %v1361
  %v1363 = vpop.xlane.xlu0 %1362
  %v1364 = vsel %vm649, %v1318, 0.0
  %1365 = vadd.xlane.f32.xlu0 %v1364
  %v1366 = vpop.xlane.xlu0 %1365
  %v1383 = vlaneseq
  %v1384 = vshrl.u32 %v1383, 7
  %v1385 = vsub.s32 %v33, %v1384
  %v1386 = vrot.slane %v1321, %v1385
  %v1387 = vadd.s32 %v33, 4294967288
  %v1388 = vlaneseq
  %v1389 = vshrl.u32 %v1388, 7
  %v1390 = vsub.s32 %v1387, %v1389
  %v1391 = vrot.slane %v1324, %v1390
  %vm1392 = vcmask 130112
  %v1393 = vsel %vm1392, %v1391, %v1386
  %v1394 = vadd.s32 %v33, 4294967280
  %v1395 = vlaneseq
  %v1396 = vshrl.u32 %v1395, 7
  %v1397 = vsub.s32 %v1394, %v1396
  %v1398 = vrot.slane %v1327, %v1397
  %vm1399 = vcmask 195712
  %v1400 = vsel %vm1399, %v1398, %v1393
  %v1401 = vadd.s32 %v33, 4294967272
  %v1402 = vlaneseq
  %v1403 = vshrl.u32 %v1402, 7
  %v1404 = vsub.s32 %v1401, %v1403
  %v1405 = vrot.slane %v1330, %v1404
  %vm1406 = vcmask 261312
  %v1407 = vsel %vm1406, %v1405, %v1400
  %v1408 = vadd.s32 %v33, 4294967264
  %v1409 = vlaneseq
  %v1410 = vshrl.u32 %v1409, 7
  %v1411 = vsub.s32 %v1408, %v1410
  %v1412 = vrot.slane %v1333, %v1411
  %vm1413 = vcmask 326912
  %v1414 = vsel %vm1413, %v1412, %v1407
  %v1415 = vadd.s32 %v33, 4294967256
  %v1416 = vlaneseq
  %v1417 = vshrl.u32 %v1416, 7
  %v1418 = vsub.s32 %v1415, %v1417
  %v1419 = vrot.slane %v1336, %v1418
  %vm1420 = vcmask 392512
  %v1421 = vsel %vm1420, %v1419, %v1414
  %v1422 = vadd.s32 %v33, 4294967248
  %v1423 = vlaneseq
  %v1424 = vshrl.u32 %v1423, 7
  %v1425 = vsub.s32 %v1422, %v1424
  %v1426 = vrot.slane %v1339, %v1425
  %vm1427 = vcmask 458112
  %v1428 = vsel %vm1427, %v1426, %v1421
  %v1429 = vadd.s32 %v33, 4294967240
  %v1430 = vlaneseq
  %v1431 = vshrl.u32 %v1430, 7
  %v1432 = vsub.s32 %v1429, %v1431
  %v1433 = vrot.slane %v1342, %v1432
  %vm1434 = vcmask 523712
  %v1435 = vsel %vm1434, %v1433, %v1428
  %v1436 = vadd.s32 %v33, 4294967232
  %v1437 = vlaneseq
  %v1438 = vshrl.u32 %v1437, 7
  %v1439 = vsub.s32 %v1436, %v1438
  %v1440 = vrot.slane %v1345, %v1439
  %vm1441 = vcmask 589312
  %v1442 = vsel %vm1441, %v1440, %v1435
  %v1443 = vadd.s32 %v33, 4294967224
  %v1444 = vlaneseq
  %v1445 = vshrl.u32 %v1444, 7
  %v1446 = vsub.s32 %v1443, %v1445
  %v1447 = vrot.slane %v1348, %v1446
  %vm1448 = vcmask 654912
  %v1449 = vsel %vm1448, %v1447, %v1442
  %v1450 = vadd.s32 %v33, 4294967216
  %v1451 = vlaneseq
  %v1452 = vshrl.u32 %v1451, 7
  %v1453 = vsub.s32 %v1450, %v1452
  %v1454 = vrot.slane %v1351, %v1453
  %vm1455 = vcmask 720512
  %v1456 = vsel %vm1455, %v1454, %v1449
  %v1457 = vadd.s32 %v33, 4294967208
  %v1458 = vlaneseq
  %v1459 = vshrl.u32 %v1458, 7
  %v1460 = vsub.s32 %v1457, %v1459
  %v1461 = vrot.slane %v1354, %v1460
  %vm1462 = vcmask 786112
  %v1463 = vsel %vm1462, %v1461, %v1456
  %v1464 = vadd.s32 %v33, 4294967200
  %v1465 = vlaneseq
  %v1466 = vshrl.u32 %v1465, 7
  %v1467 = vsub.s32 %v1464, %v1466
  %v1468 = vrot.slane %v1357, %v1467
  %vm1469 = vcmask 851712
  %v1470 = vsel %vm1469, %v1468, %v1463
  %v1471 = vadd.s32 %v33, 4294967192
  %v1472 = vlaneseq
  %v1473 = vshrl.u32 %v1472, 7
  %v1474 = vsub.s32 %v1471, %v1473
  %v1475 = vrot.slane %v1360, %v1474
  %vm1476 = vcmask 917312
  %v1477 = vsel %vm1476, %v1475, %v1470
  %v1478 = vadd.s32 %v33, 4294967184
  %v1479 = vlaneseq
  %v1480 = vshrl.u32 %v1479, 7
  %v1481 = vsub.s32 %v1478, %v1480
  %v1482 = vrot.slane %v1363, %v1481
  %vm1483 = vcmask 982912
  %v1484 = vsel %vm1483, %v1482, %v1477
  %v1485 = vadd.s32 %v33, 4294967176
  %v1486 = vlaneseq
  %v1487 = vshrl.u32 %v1486, 7
  %v1488 = vsub.s32 %v1485, %v1487
  %v1489 = vrot.slane %v1366, %v1488
  %vm1490 = vcmask 1048512
  %v1491 = vsel %vm1490, %v1489, %v1484
  %1493 = vst [vmem:[%s9] sm:$0x1] %v1491
  // Predicated region
  $region38: #{mlp_forward.1} parent=0 // pred_check
    _
  $region39: #{mlp_forward.1} parent=0 // pred_check_branch
    %1495 = sbr.rel (0) target = $region41
  $region40: #{mlp_forward.1} parent=0 // pred_region
    _
  $region41: #{mlp_forward.1} parent=0 // pred_fallthru
    _
  // Predicated region
  $region42: #{mlp_forward.1} parent=0 // pred_check
    _
  $region43: #{mlp_forward.1} parent=0 // pred_check_branch
    %1497 = sbr.rel (0) target = $region45
  $region44: #{mlp_forward.1} parent=0 // pred_region
    _
  $region45: #{mlp_forward.1} parent=0 // pred_fallthru
    _

</llo_original>
